<compile_context>
chip_gen: v5e
topology: v5e:2x2
jax: 0.10.0
libtpu: 0.0.40
codegen_flags: <defaults>
</compile_context>

<pallas_src>
import functools

import jax
import jax.numpy as jnp
import numpy as np
from jax.experimental import pallas as pl
from jax.experimental.pallas import tpu as pltpu

KSIZE = 7            # spatial-attention conv kernel size
PAD = 3              # padding=3 in the PyTorch Conv2d
KK = KSIZE * KSIZE   # 49


def _cbam_kernel(conv_w_ref, x_ref, w1t_ref, w2t_ref, o_ref,
                 padm_ref, padx_ref, *, H, W, base):
    """One block of Bb images per grid step.

    conv_w_ref : SMEM (98,)        spatial conv weights, [c*49 + kh*7 + kw]
    x_ref      : VMEM (Bb, C, H*W) lane-dense image block
    w1t_ref    : VMEM (C, hidden)  == W1.T of nn.Linear(ch, ch//ratio)
    w2t_ref    : VMEM (hidden, C)  == W2.T of nn.Linear(ch//ratio, ch)
    o_ref      : VMEM (Bb, C, H*W)
    padm_ref   : VMEM (Bb, BUF)    zero-margin flattened mean map
    padx_ref   : VMEM (Bb, BUF)    zero-margin flattened max map
    """
    HW = H * W
    Bb, C, _ = x_ref.shape

    xb = x_ref[...].astype(jnp.float32)                        # (Bb, C, HW)

    # ---------------- channel attention ----------------
    avg = jnp.mean(xb, axis=2)                                 # (Bb, C) adaptive avg pool
    mxp = jnp.max(xb, axis=2)                                  # (Bb, C) adaptive max pool

    w1t = w1t_ref[...]
    w2t = w2t_ref[...]
    h_avg = jnp.maximum(jnp.dot(avg, w1t, preferred_element_type=jnp.float32), 0.0)
    h_max = jnp.maximum(jnp.dot(mxp, w1t, preferred_element_type=jnp.float32), 0.0)
    mlp = (jnp.dot(h_avg, w2t, preferred_element_type=jnp.float32)
           + jnp.dot(h_max, w2t, preferred_element_type=jnp.float32))
    ca = jax.nn.sigmoid(mlp)                                   # (Bb, C)
    x_ca = xb * ca[:, :, None]                                 # (Bb, C, HW)  lane-dense

    # ---------------- spatial attention ----------------
    mean_c = jnp.mean(x_ca, axis=1)                            # (Bb, HW) mean over channels
    max_c = jnp.max(x_ca, axis=1)                              # (Bb, HW) max over channels

    # Zero the scratch every step (cheap; keeps zero margins valid regardless
    # of how the "parallel" batch axis is split across cores), then write the
    # image interior at lane offset `base`.  Rows outside the image land in
    # the zero margins, which implements the conv's zero row-padding.
    padm_ref[...] = jnp.zeros_like(padm_ref)
    padx_ref[...] = jnp.zeros_like(padx_ref)
    padm_ref[:, base:base + HW] = mean_c
    padx_ref[:, base:base + HW] = max_c

    # Column index of every lane (for masking out cross-row column overflow).
    col = jax.lax.broadcasted_iota(jnp.int32, (1, HW), 1) % W  # (1, HW)

    # 7x7 conv over the 2-channel (mean, max) map, statically unrolled.
    # Split accumulators -> independent add chains the VPU can co-issue.
    acc0 = jnp.zeros((Bb, HW), jnp.float32)
    acc1 = jnp.zeros((Bb, HW), jnp.float32)
    for kw in range(KSIZE):
        dx = kw - PAD
        lo = max(0, -dx)
        hi = W - 1 - max(0, dx)
        inner0 = jnp.zeros((Bb, HW), jnp.float32)
        inner1 = jnp.zeros((Bb, HW), jnp.float32)
        for kh in range(KSIZE):
            off = base + (kh - PAD) * W + dx                   # static lane offset
            wm = conv_w_ref[kh * KSIZE + kw]                   # weight for the mean map
            wx = conv_w_ref[KK + kh * KSIZE + kw]              # weight for the max map
            term = (padm_ref[:, off:off + HW] * wm
                    + padx_ref[:, off:off + HW] * wx)
            if kh % 2 == 0:
                inner0 = inner0 + term
            else:
                inner1 = inner1 + term
        mask = jnp.logical_and(col >= lo, col <= hi)           # valid output columns for dx
        masked = jnp.where(mask, inner0 + inner1, 0.0)
        if kw % 2 == 0:
            acc0 = acc0 + masked
        else:
            acc1 = acc1 + masked

    sa = jax.nn.sigmoid(acc0 + acc1)                           # (Bb, HW)
    o_ref[...] = (x_ca * sa[:, None, :]).astype(o_ref.dtype)   # lane-dense unmasked store


def _choose_block_b(B, C, HW, itemsize, target_bytes=2 << 20):
    """Pick images-per-block: ~2 MiB blocks, divides B, keeps >=2 grid steps."""
    per_img = max(1, C * HW * itemsize)
    bb = int(max(1, min(B, target_bytes // per_img)))
    if bb >= B and B > 1:          # leave >=2 grid steps so both v7x TCs get work
        bb = max(1, B // 2)
    while B % bb != 0:
        bb -= 1
    return bb


def cbam_forward(x, w1, w2, conv_w):
    """x: (B,C,H,W); w1: (hidden,C)=Linear(C,C//r).weight; w2: (C,hidden); conv_w: (1,2,7,7)."""
    B, C, H, W = x.shape
    HW = H * W
    hidden = w1.shape[0]
    itemsize = jnp.dtype(x.dtype).itemsize

    x3 = x.reshape(B, C, HW)                                   # free: NCHW is contiguous
    w1t = jnp.asarray(w1.T, jnp.float32)                       # (C, hidden)
    w2t = jnp.asarray(w2.T, jnp.float32)                       # (hidden, C)
    conv_flat = jnp.asarray(conv_w, jnp.float32).reshape(2 * KK)  # (98,) for 1-D SMEM

    bb = _choose_block_b(B, C, HW, itemsize)
    base = 3 * W + 8                                           # interior lane offset (>= 3*W+3)
    buf_len = ((base + HW + 3 * W + 8 + 127) // 128) * 128     # flattened padded-map length

    block_bytes = bb * C * HW * itemsize
    # Explicit scoped-VMEM budget; capped at 64 MiB so it is valid on v7x too.
    vmem_limit = int(min(64 << 20, max(32 << 20, 8 * block_bytes)))

    kernel = functools.partial(_cbam_kernel, H=H, W=W, base=base)

    grid_spec = pltpu.PrefetchScalarGridSpec(
        num_scalar_prefetch=0,
        grid=(B // bb,),
        in_specs=[
            pl.BlockSpec(memory_space=pltpu.MemorySpace.SMEM),      # conv weights (scalars)
            pl.BlockSpec((bb, C, HW), lambda b: (b, 0, 0)),         # x, bb images per step
            pl.BlockSpec((C, hidden), lambda b: (0, 0)),            # W1.T (resident)
            pl.BlockSpec((hidden, C), lambda b: (0, 0)),            # W2.T (resident)
        ],
        out_specs=pl.BlockSpec((bb, C, HW), lambda b: (b, 0, 0)),
        scratch_shapes=[
            pltpu.VMEM((bb, buf_len), jnp.float32),                 # padded mean map
            pltpu.VMEM((bb, buf_len), jnp.float32),                 # padded max map
        ],
    )
    out3 = pl.pallas_call(
        kernel,
        out_shape=jax.ShapeDtypeStruct((B, C, HW), x.dtype),
        grid_spec=grid_spec,
        compiler_params=pltpu.CompilerParams(
            dimension_semantics=("parallel",),
            vmem_limit_bytes=vmem_limit,
        ),
    )(conv_flat, x3, w1t, w2t)
    return out3.reshape(B, C, H, W)


def cbam_reference(x, w1, w2, conv_w):
    """Pure-JAX reference mirroring the PyTorch forward exactly."""
    # channel attention
    avg = jnp.mean(x, axis=(2, 3))                # (B, C)
    mx = jnp.max(x, axis=(2, 3))                  # (B, C)

    def mlp(v):
        return jnp.maximum(v @ w1.T, 0.0) @ w2.T

    ca = jax.nn.sigmoid(mlp(avg) + mlp(mx))[:, :, None, None]
    x = x * ca
    # spatial attention
    mean_c = jnp.mean(x, axis=1, keepdims=True)
    max_c = jnp.max(x, axis=1, keepdims=True)
    feats = jnp.concatenate([mean_c, max_c], axis=1)    # (B, 2, H, W)
    conv = jax.lax.conv_general_dilated(
        feats, conv_w, window_strides=(1, 1), padding=[(PAD, PAD), (PAD, PAD)],
        dimension_numbers=("NCHW", "OIHW", "NCHW"))
    sa = jax.nn.sigmoid(conv)
    return x * sa


if __name__ == "__main__":
    B, C, H, W = 2, 16, 16, 16
    ratio = 8
    hidden = C // ratio

    key = jax.random.PRNGKey(0)
    kx, k1, k2, kc = jax.random.split(key, 4)
    x = jax.random.normal(kx, (B, C, H, W), jnp.float32)
    w1 = jax.random.normal(k1, (hidden, C), jnp.float32) * 0.2      # Linear(C, C//ratio).weight
    w2 = jax.random.normal(k2, (C, hidden), jnp.float32) * 0.2      # Linear(C//ratio, C).weight
    conv_w = jax.random.normal(kc, (1, 2, KSIZE, KSIZE), jnp.float32) * 0.1  # Conv2d(2,1,7,bias=False).weight

    out = jax.block_until_ready(cbam_forward(x, w1, w2, conv_w))
    ref = jax.block_until_ready(cbam_reference(x, w1, w2, conv_w))
    np.testing.assert_allclose(np.asarray(out), np.asarray(ref), atol=1e-5, rtol=1e-5)

    print("KERNEL_OK")
</pallas_src>

<mosaic_0001>
module attributes {stable_mosaic.version = 11 : i64} {
  func.func @_cbam_kernel(%arg0: i32, %arg1: memref<98xf32, #tpu.memory_space<smem>>, %arg2: memref<1x16x256xf32, #tpu.memory_space<vmem>>, %arg3: memref<16x2xf32, #tpu.memory_space<vmem>>, %arg4: memref<2x16xf32, #tpu.memory_space<vmem>>, %arg5: memref<1x16x256xf32, #tpu.memory_space<vmem>>, %arg6: memref<1x384xf32, #tpu.memory_space<vmem>>, %arg7: memref<1x384xf32, #tpu.memory_space<vmem>>) attributes {dimension_semantics = [#tpu.dimension_semantics<parallel>], iteration_bounds = array<i64: 2>, scalar_prefetch = 0 : i64, scratch_operands = 2 : i64, tpu.core_type = #tpu.core_type<tc>, window_params = [{transform_indices = @transform_0, window_bounds = array<i64: 98>}, {transform_indices = @transform_1, window_bounds = array<i64: 1, 16, 256>}, {pipeline_mode = #tpu.pipeline_mode<synchronous>, transform_indices = @transform_2, window_bounds = array<i64: 16, 2>}, {pipeline_mode = #tpu.pipeline_mode<synchronous>, transform_indices = @transform_3, window_bounds = array<i64: 2, 16>}, {transform_indices = @transform_4, window_bounds = array<i64: 1, 16, 256>}]} {
    %c0 = arith.constant 0 : index
    %c0_0 = arith.constant 0 : index
    %c0_1 = arith.constant 0 : index
    %0 = vector.load %arg2[%c0, %c0_0, %c0_1] : memref<1x16x256xf32, #tpu.memory_space<vmem>>, vector<1x16x256xf32>
    %cst = arith.constant dense<0.000000e+00> : vector<1x16xf32>
    %1 = vector.multi_reduction <add>, %0, %cst [2] : vector<1x16x256xf32> to vector<1x16xf32>
    %cst_2 = arith.constant 2.560000e+02 : f32
    %2 = vector.broadcast %cst_2 : f32 to vector<1x16xf32>
    %3 = arith.divf %1, %2 : vector<1x16xf32>
    %cst_3 = arith.constant dense<0xFF800000> : vector<1x16xf32>
    %4 = vector.multi_reduction <maximumf>, %0, %cst_3 [2] : vector<1x16x256xf32> to vector<1x16xf32>
    %c0_4 = arith.constant 0 : index
    %c0_5 = arith.constant 0 : index
    %5 = vector.load %arg3[%c0_4, %c0_5] : memref<16x2xf32, #tpu.memory_space<vmem>>, vector<16x2xf32>
    %c0_6 = arith.constant 0 : index
    %c0_7 = arith.constant 0 : index
    %6 = vector.load %arg4[%c0_6, %c0_7] : memref<2x16xf32, #tpu.memory_space<vmem>>, vector<2x16xf32>
    %cst_8 = arith.constant dense<0.000000e+00> : vector<1x2xf32>
    %7 = tpu.matmul %3, %5, %cst_8 {dimension_numbers = #tpu.dot_dimension_numbers<[1], [0], [0], [1], [0, 0, 1, 1], [], []>} : vector<1x16xf32>, vector<16x2xf32>, vector<1x2xf32> -> vector<1x2xf32>
    %cst_9 = arith.constant 0.000000e+00 : f32
    %8 = vector.broadcast %cst_9 : f32 to vector<1x2xf32>
    %9 = arith.maximumf %7, %8 : vector<1x2xf32>
    %cst_10 = arith.constant dense<0.000000e+00> : vector<1x2xf32>
    %10 = tpu.matmul %4, %5, %cst_10 {dimension_numbers = #tpu.dot_dimension_numbers<[1], [0], [0], [1], [0, 0, 1, 1], [], []>} : vector<1x16xf32>, vector<16x2xf32>, vector<1x2xf32> -> vector<1x2xf32>
    %cst_11 = arith.constant 0.000000e+00 : f32
    %11 = vector.broadcast %cst_11 : f32 to vector<1x2xf32>
    %12 = arith.maximumf %10, %11 : vector<1x2xf32>
    %cst_12 = arith.constant dense<0.000000e+00> : vector<1x16xf32>
    %13 = tpu.matmul %9, %6, %cst_12 {dimension_numbers = #tpu.dot_dimension_numbers<[1], [0], [0], [1], [0, 0, 1, 1], [], []>} : vector<1x2xf32>, vector<2x16xf32>, vector<1x16xf32> -> vector<1x16xf32>
    %cst_13 = arith.constant dense<0.000000e+00> : vector<1x16xf32>
    %14 = tpu.matmul %12, %6, %cst_13 {dimension_numbers = #tpu.dot_dimension_numbers<[1], [0], [0], [1], [0, 0, 1, 1], [], []>} : vector<1x2xf32>, vector<2x16xf32>, vector<1x16xf32> -> vector<1x16xf32>
    %15 = arith.addf %13, %14 : vector<1x16xf32>
    %16 = arith.negf %15 : vector<1x16xf32>
    %17 = math.exp %16 : vector<1x16xf32>
    %cst_14 = arith.constant 1.000000e+00 : f32
    %18 = vector.broadcast %cst_14 : f32 to vector<1x16xf32>
    %19 = arith.addf %18, %17 : vector<1x16xf32>
    %20 = arith.divf %18, %19 : vector<1x16xf32>
    %21 = vector.shape_cast %20 : vector<1x16xf32> to vector<1x16x1xf32>
    %22 = vector.broadcast %21 : vector<1x16x1xf32> to vector<1x16x256xf32>
    %23 = arith.mulf %0, %22 : vector<1x16x256xf32>
    %cst_15 = arith.constant dense<0.000000e+00> : vector<1x256xf32>
    %24 = vector.multi_reduction <add>, %23, %cst_15 [1] : vector<1x16x256xf32> to vector<1x256xf32>
    %cst_16 = arith.constant 1.600000e+01 : f32
    %25 = vector.broadcast %cst_16 : f32 to vector<1x256xf32>
    %26 = arith.divf %24, %25 : vector<1x256xf32>
    %cst_17 = arith.constant dense<0xFF800000> : vector<1x256xf32>
    %27 = vector.multi_reduction <maximumf>, %23, %cst_17 [1] : vector<1x16x256xf32> to vector<1x256xf32>
    %cst_18 = arith.constant 0.000000e+00 : f32
    %28 = vector.broadcast %cst_18 : f32 to vector<1x384xf32>
    %c0_19 = arith.constant 0 : index
    %c0_20 = arith.constant 0 : index
    %29 = vector.load %arg6[%c0_19, %c0_20] : memref<1x384xf32, #tpu.memory_space<vmem>>, vector<1x384xf32>
    tpu.vector_store %arg6[%c0_19, %c0_20], %28 {strides = array<i32>} : memref<1x384xf32, #tpu.memory_space<vmem>>, vector<1x384xf32>,
    %cst_21 = arith.constant 0.000000e+00 : f32
    %30 = vector.broadcast %cst_21 : f32 to vector<1x384xf32>
    %c0_22 = arith.constant 0 : index
    %c0_23 = arith.constant 0 : index
    %31 = vector.load %arg7[%c0_22, %c0_23] : memref<1x384xf32, #tpu.memory_space<vmem>>, vector<1x384xf32>
    tpu.vector_store %arg7[%c0_22, %c0_23], %30 {strides = array<i32>} : memref<1x384xf32, #tpu.memory_space<vmem>>, vector<1x384xf32>,
    %c0_24 = arith.constant 0 : index
    %c56 = arith.constant 56 : index
    %32 = vector.load %arg6[%c0_24, %c56] : memref<1x384xf32, #tpu.memory_space<vmem>>, vector<1x256xf32>
    tpu.vector_store %arg6[%c0_24, %c56], %26 {strides = array<i32>} : memref<1x384xf32, #tpu.memory_space<vmem>>, vector<1x256xf32>,
    %c0_25 = arith.constant 0 : index
    %c56_26 = arith.constant 56 : index
    %33 = vector.load %arg7[%c0_25, %c56_26] : memref<1x384xf32, #tpu.memory_space<vmem>>, vector<1x256xf32>
    tpu.vector_store %arg7[%c0_25, %c56_26], %27 {strides = array<i32>} : memref<1x384xf32, #tpu.memory_space<vmem>>, vector<1x256xf32>,
    %34 = tpu.iota {dimensions = array<i32: 1>} : vector<1x256xi32>
    %c16_i32 = arith.constant 16 : i32
    %c0_i32 = arith.constant 0 : i32
    %35 = arith.cmpi eq, %c16_i32, %c0_i32 : i32
    %c1_i32 = arith.constant 1 : i32
    %36 = arith.select %35, %c1_i32, %c16_i32 : i32
    %37 = vector.broadcast %36 : i32 to vector<1x256xi32>
    %38 = arith.remsi %34, %37 : vector<1x256xi32>
    %c0_i32_27 = arith.constant 0 : i32
    %39 = vector.broadcast %c0_i32_27 : i32 to vector<1x256xi32>
    %40 = arith.cmpi ne, %38, %39 : vector<1x256xi32>
    %c0_i32_28 = arith.constant 0 : i32
    %41 = vector.broadcast %c0_i32_28 : i32 to vector<1x256xi32>
    %42 = arith.cmpi slt, %38, %41 : vector<1x256xi32>
    %c0_i32_29 = arith.constant 0 : i32
    %43 = arith.cmpi slt, %36, %c0_i32_29 : i32
    %44 = vector.broadcast %43 : i1 to vector<1x256xi1>
    %45 = vector.broadcast %44 : vector<1x256xi1> to vector<1x256xi1>
    %46 = arith.xori %42, %45 : vector<1x256xi1>
    %47 = arith.andi %46, %40 : vector<1x256xi1>
    %48 = vector.broadcast %36 : i32 to vector<1x256xi32>
    %49 = arith.addi %38, %48 : vector<1x256xi32>
    %50 = arith.select %47, %49, %38 : vector<1x256xi1>, vector<1x256xi32>
    %cst_30 = arith.constant 0.000000e+00 : f32
    %51 = vector.broadcast %cst_30 : f32 to vector<1x256xf32>
    %cst_31 = arith.constant 0.000000e+00 : f32
    %52 = vector.broadcast %cst_31 : f32 to vector<1x256xf32>
    %cst_32 = arith.constant 0.000000e+00 : f32
    %53 = vector.broadcast %cst_32 : f32 to vector<1x256xf32>
    %cst_33 = arith.constant 0.000000e+00 : f32
    %54 = vector.broadcast %cst_33 : f32 to vector<1x256xf32>
    %c0_34 = arith.constant 0 : index
    %55 = memref.load %arg1[%c0_34] : memref<98xf32, #tpu.memory_space<smem>>
    %c49 = arith.constant 49 : index
    %56 = memref.load %arg1[%c49] : memref<98xf32, #tpu.memory_space<smem>>
    %c0_35 = arith.constant 0 : index
    %c5 = arith.constant 5 : index
    %57 = vector.load %arg6[%c0_35, %c5] : memref<1x384xf32, #tpu.memory_space<vmem>>, vector<1x256xf32>
    %58 = vector.broadcast %55 : f32 to vector<1x256xf32>
    %59 = arith.mulf %57, %58 : vector<1x256xf32>
    %c0_36 = arith.constant 0 : index
    %c5_37 = arith.constant 5 : index
    %60 = vector.load %arg7[%c0_36, %c5_37] : memref<1x384xf32, #tpu.memory_space<vmem>>, vector<1x256xf32>
    %61 = vector.broadcast %56 : f32 to vector<1x256xf32>
    %62 = arith.mulf %60, %61 : vector<1x256xf32>
    %63 = arith.addf %59, %62 : vector<1x256xf32>
    %64 = arith.addf %53, %63 : vector<1x256xf32>
    %c7 = arith.constant 7 : index
    %65 = memref.load %arg1[%c7] : memref<98xf32, #tpu.memory_space<smem>>
    %c56_38 = arith.constant 56 : index
    %66 = memref.load %arg1[%c56_38] : memref<98xf32, #tpu.memory_space<smem>>
    %c0_39 = arith.constant 0 : index
    %c21 = arith.constant 21 : index
    %67 = vector.load %arg6[%c0_39, %c21] : memref<1x384xf32, #tpu.memory_space<vmem>>, vector<1x256xf32>
    %68 = vector.broadcast %65 : f32 to vector<1x256xf32>
    %69 = arith.mulf %67, %68 : vector<1x256xf32>
    %c0_40 = arith.constant 0 : index
    %c21_41 = arith.constant 21 : index
    %70 = vector.load %arg7[%c0_40, %c21_41] : memref<1x384xf32, #tpu.memory_space<vmem>>, vector<1x256xf32>
    %71 = vector.broadcast %66 : f32 to vector<1x256xf32>
    %72 = arith.mulf %70, %71 : vector<1x256xf32>
    %73 = arith.addf %69, %72 : vector<1x256xf32>
    %74 = arith.addf %54, %73 : vector<1x256xf32>
    %c14 = arith.constant 14 : index
    %75 = memref.load %arg1[%c14] : memref<98xf32, #tpu.memory_space<smem>>
    %c63 = arith.constant 63 : index
    %76 = memref.load %arg1[%c63] : memref<98xf32, #tpu.memory_space<smem>>
    %c0_42 = arith.constant 0 : index
    %c37 = arith.constant 37 : index
    %77 = vector.load %arg6[%c0_42, %c37] : memref<1x384xf32, #tpu.memory_space<vmem>>, vector<1x256xf32>
    %78 = vector.broadcast %75 : f32 to vector<1x256xf32>
    %79 = arith.mulf %77, %78 : vector<1x256xf32>
    %c0_43 = arith.constant 0 : index
    %c37_44 = arith.constant 37 : index
    %80 = vector.load %arg7[%c0_43, %c37_44] : memref<1x384xf32, #tpu.memory_space<vmem>>, vector<1x256xf32>
    %81 = vector.broadcast %76 : f32 to vector<1x256xf32>
    %82 = arith.mulf %80, %81 : vector<1x256xf32>
    %83 = arith.addf %79, %82 : vector<1x256xf32>
    %84 = arith.addf %64, %83 : vector<1x256xf32>
    %c21_45 = arith.constant 21 : index
    %85 = memref.load %arg1[%c21_45] : memref<98xf32, #tpu.memory_space<smem>>
    %c70 = arith.constant 70 : index
    %86 = memref.load %arg1[%c70] : memref<98xf32, #tpu.memory_space<smem>>
    %c0_46 = arith.constant 0 : index
    %c53 = arith.constant 53 : index
    %87 = vector.load %arg6[%c0_46, %c53] : memref<1x384xf32, #tpu.memory_space<vmem>>, vector<1x256xf32>
    %88 = vector.broadcast %85 : f32 to vector<1x256xf32>
    %89 = arith.mulf %87, %88 : vector<1x256xf32>
    %c0_47 = arith.constant 0 : index
    %c53_48 = arith.constant 53 : index
    %90 = vector.load %arg7[%c0_47, %c53_48] : memref<1x384xf32, #tpu.memory_space<vmem>>, vector<1x256xf32>
    %91 = vector.broadcast %86 : f32 to vector<1x256xf32>
    %92 = arith.mulf %90, %91 : vector<1x256xf32>
    %93 = arith.addf %89, %92 : vector<1x256xf32>
    %94 = arith.addf %74, %93 : vector<1x256xf32>
    %c28 = arith.constant 28 : index
    %95 = memref.load %arg1[%c28] : memref<98xf32, #tpu.memory_space<smem>>
    %c77 = arith.constant 77 : index
    %96 = memref.load %arg1[%c77] : memref<98xf32, #tpu.memory_space<smem>>
    %c0_49 = arith.constant 0 : index
    %c69 = arith.constant 69 : index
    %97 = vector.load %arg6[%c0_49, %c69] : memref<1x384xf32, #tpu.memory_space<vmem>>, vector<1x256xf32>
    %98 = vector.broadcast %95 : f32 to vector<1x256xf32>
    %99 = arith.mulf %97, %98 : vector<1x256xf32>
    %c0_50 = arith.constant 0 : index
    %c69_51 = arith.constant 69 : index
    %100 = vector.load %arg7[%c0_50, %c69_51] : memref<1x384xf32, #tpu.memory_space<vmem>>, vector<1x256xf32>
    %101 = vector.broadcast %96 : f32 to vector<1x256xf32>
    %102 = arith.mulf %100, %101 : vector<1x256xf32>
    %103 = arith.addf %99, %102 : vector<1x256xf32>
    %104 = arith.addf %84, %103 : vector<1x256xf32>
    %c35 = arith.constant 35 : index
    %105 = memref.load %arg1[%c35] : memref<98xf32, #tpu.memory_space<smem>>
    %c84 = arith.constant 84 : index
    %106 = memref.load %arg1[%c84] : memref<98xf32, #tpu.memory_space<smem>>
    %c0_52 = arith.constant 0 : index
    %c85 = arith.constant 85 : index
    %107 = vector.load %arg6[%c0_52, %c85] : memref<1x384xf32, #tpu.memory_space<vmem>>, vector<1x256xf32>
    %108 = vector.broadcast %105 : f32 to vector<1x256xf32>
    %109 = arith.mulf %107, %108 : vector<1x256xf32>
    %c0_53 = arith.constant 0 : index
    %c85_54 = arith.constant 85 : index
    %110 = vector.load %arg7[%c0_53, %c85_54] : memref<1x384xf32, #tpu.memory_space<vmem>>, vector<1x256xf32>
    %111 = vector.broadcast %106 : f32 to vector<1x256xf32>
    %112 = arith.mulf %110, %111 : vector<1x256xf32>
    %113 = arith.addf %109, %112 : vector<1x256xf32>
    %114 = arith.addf %94, %113 : vector<1x256xf32>
    %c42 = arith.constant 42 : index
    %115 = memref.load %arg1[%c42] : memref<98xf32, #tpu.memory_space<smem>>
    %c91 = arith.constant 91 : index
    %116 = memref.load %arg1[%c91] : memref<98xf32, #tpu.memory_space<smem>>
    %c0_55 = arith.constant 0 : index
    %c101 = arith.constant 101 : index
    %117 = vector.load %arg6[%c0_55, %c101] : memref<1x384xf32, #tpu.memory_space<vmem>>, vector<1x256xf32>
    %118 = vector.broadcast %115 : f32 to vector<1x256xf32>
    %119 = arith.mulf %117, %118 : vector<1x256xf32>
    %c0_56 = arith.constant 0 : index
    %c101_57 = arith.constant 101 : index
    %120 = vector.load %arg7[%c0_56, %c101_57] : memref<1x384xf32, #tpu.memory_space<vmem>>, vector<1x256xf32>
    %121 = vector.broadcast %116 : f32 to vector<1x256xf32>
    %122 = arith.mulf %120, %121 : vector<1x256xf32>
    %123 = arith.addf %119, %122 : vector<1x256xf32>
    %124 = arith.addf %104, %123 : vector<1x256xf32>
    %c3_i32 = arith.constant 3 : i32
    %125 = vector.broadcast %c3_i32 : i32 to vector<1x256xi32>
    %126 = arith.cmpi sge, %50, %125 : vector<1x256xi32>
    %c15_i32 = arith.constant 15 : i32
    %127 = vector.broadcast %c15_i32 : i32 to vector<1x256xi32>
    %128 = arith.cmpi sle, %50, %127 : vector<1x256xi32>
    %129 = arith.andi %126, %128 : vector<1x256xi1>
    %130 = arith.addf %124, %114 : vector<1x256xf32>
    %cst_58 = arith.constant 0.000000e+00 : f32
    %131 = vector.broadcast %cst_58 : f32 to vector<1x256xf32>
    %132 = arith.select %129, %130, %131 : vector<1x256xi1>, vector<1x256xf32>
    %133 = arith.addf %51, %132 : vector<1x256xf32>
    %cst_59 = arith.constant 0.000000e+00 : f32
    %134 = vector.broadcast %cst_59 : f32 to vector<1x256xf32>
    %cst_60 = arith.constant 0.000000e+00 : f32
    %135 = vector.broadcast %cst_60 : f32 to vector<1x256xf32>
    %c1 = arith.constant 1 : index
    %136 = memref.load %arg1[%c1] : memref<98xf32, #tpu.memory_space<smem>>
    %c50 = arith.constant 50 : index
    %137 = memref.load %arg1[%c50] : memref<98xf32, #tpu.memory_space<smem>>
    %c0_61 = arith.constant 0 : index
    %c6 = arith.constant 6 : index
    %138 = vector.load %arg6[%c0_61, %c6] : memref<1x384xf32, #tpu.memory_space<vmem>>, vector<1x256xf32>
    %139 = vector.broadcast %136 : f32 to vector<1x256xf32>
    %140 = arith.mulf %138, %139 : vector<1x256xf32>
    %c0_62 = arith.constant 0 : index
    %c6_63 = arith.constant 6 : index
    %141 = vector.load %arg7[%c0_62, %c6_63] : memref<1x384xf32, #tpu.memory_space<vmem>>, vector<1x256xf32>
    %142 = vector.broadcast %137 : f32 to vector<1x256xf32>
    %143 = arith.mulf %141, %142 : vector<1x256xf32>
    %144 = arith.addf %140, %143 : vector<1x256xf32>
    %145 = arith.addf %134, %144 : vector<1x256xf32>
    %c8 = arith.constant 8 : index
    %146 = memref.load %arg1[%c8] : memref<98xf32, #tpu.memory_space<smem>>
    %c57 = arith.constant 57 : index
    %147 = memref.load %arg1[%c57] : memref<98xf32, #tpu.memory_space<smem>>
    %c0_64 = arith.constant 0 : index
    %c22 = arith.constant 22 : index
    %148 = vector.load %arg6[%c0_64, %c22] : memref<1x384xf32, #tpu.memory_space<vmem>>, vector<1x256xf32>
    %149 = vector.broadcast %146 : f32 to vector<1x256xf32>
    %150 = arith.mulf %148, %149 : vector<1x256xf32>
    %c0_65 = arith.constant 0 : index
    %c22_66 = arith.constant 22 : index
    %151 = vector.load %arg7[%c0_65, %c22_66] : memref<1x384xf32, #tpu.memory_space<vmem>>, vector<1x256xf32>
    %152 = vector.broadcast %147 : f32 to vector<1x256xf32>
    %153 = arith.mulf %151, %152 : vector<1x256xf32>
    %154 = arith.addf %150, %153 : vector<1x256xf32>
    %155 = arith.addf %135, %154 : vector<1x256xf32>
    %c15 = arith.constant 15 : index
    %156 = memref.load %arg1[%c15] : memref<98xf32, #tpu.memory_space<smem>>
    %c64 = arith.constant 64 : index
    %157 = memref.load %arg1[%c64] : memref<98xf32, #tpu.memory_space<smem>>
    %c0_67 = arith.constant 0 : index
    %c38 = arith.constant 38 : index
    %158 = vector.load %arg6[%c0_67, %c38] : memref<1x384xf32, #tpu.memory_space<vmem>>, vector<1x256xf32>
    %159 = vector.broadcast %156 : f32 to vector<1x256xf32>
    %160 = arith.mulf %158, %159 : vector<1x256xf32>
    %c0_68 = arith.constant 0 : index
    %c38_69 = arith.constant 38 : index
    %161 = vector.load %arg7[%c0_68, %c38_69] : memref<1x384xf32, #tpu.memory_space<vmem>>, vector<1x256xf32>
    %162 = vector.broadcast %157 : f32 to vector<1x256xf32>
    %163 = arith.mulf %161, %162 : vector<1x256xf32>
    %164 = arith.addf %160, %163 : vector<1x256xf32>
    %165 = arith.addf %145, %164 : vector<1x256xf32>
    %c22_70 = arith.constant 22 : index
    %166 = memref.load %arg1[%c22_70] : memref<98xf32, #tpu.memory_space<smem>>
    %c71 = arith.constant 71 : index
    %167 = memref.load %arg1[%c71] : memref<98xf32, #tpu.memory_space<smem>>
    %c0_71 = arith.constant 0 : index
    %c54 = arith.constant 54 : index
    %168 = vector.load %arg6[%c0_71, %c54] : memref<1x384xf32, #tpu.memory_space<vmem>>, vector<1x256xf32>
    %169 = vector.broadcast %166 : f32 to vector<1x256xf32>
    %170 = arith.mulf %168, %169 : vector<1x256xf32>
    %c0_72 = arith.constant 0 : index
    %c54_73 = arith.constant 54 : index
    %171 = vector.load %arg7[%c0_72, %c54_73] : memref<1x384xf32, #tpu.memory_space<vmem>>, vector<1x256xf32>
    %172 = vector.broadcast %167 : f32 to vector<1x256xf32>
    %173 = arith.mulf %171, %172 : vector<1x256xf32>
    %174 = arith.addf %170, %173 : vector<1x256xf32>
    %175 = arith.addf %155, %174 : vector<1x256xf32>
    %c29 = arith.constant 29 : index
    %176 = memref.load %arg1[%c29] : memref<98xf32, #tpu.memory_space<smem>>
    %c78 = arith.constant 78 : index
    %177 = memref.load %arg1[%c78] : memref<98xf32, #tpu.memory_space<smem>>
    %c0_74 = arith.constant 0 : index
    %c70_75 = arith.constant 70 : index
    %178 = vector.load %arg6[%c0_74, %c70_75] : memref<1x384xf32, #tpu.memory_space<vmem>>, vector<1x256xf32>
    %179 = vector.broadcast %176 : f32 to vector<1x256xf32>
    %180 = arith.mulf %178, %179 : vector<1x256xf32>
    %c0_76 = arith.constant 0 : index
    %c70_77 = arith.constant 70 : index
    %181 = vector.load %arg7[%c0_76, %c70_77] : memref<1x384xf32, #tpu.memory_space<vmem>>, vector<1x256xf32>
    %182 = vector.broadcast %177 : f32 to vector<1x256xf32>
    %183 = arith.mulf %181, %182 : vector<1x256xf32>
    %184 = arith.addf %180, %183 : vector<1x256xf32>
    %185 = arith.addf %165, %184 : vector<1x256xf32>
    %c36 = arith.constant 36 : index
    %186 = memref.load %arg1[%c36] : memref<98xf32, #tpu.memory_space<smem>>
    %c85_78 = arith.constant 85 : index
    %187 = memref.load %arg1[%c85_78] : memref<98xf32, #tpu.memory_space<smem>>
    %c0_79 = arith.constant 0 : index
    %c86 = arith.constant 86 : index
    %188 = vector.load %arg6[%c0_79, %c86] : memref<1x384xf32, #tpu.memory_space<vmem>>, vector<1x256xf32>
    %189 = vector.broadcast %186 : f32 to vector<1x256xf32>
    %190 = arith.mulf %188, %189 : vector<1x256xf32>
    %c0_80 = arith.constant 0 : index
    %c86_81 = arith.constant 86 : index
    %191 = vector.load %arg7[%c0_80, %c86_81] : memref<1x384xf32, #tpu.memory_space<vmem>>, vector<1x256xf32>
    %192 = vector.broadcast %187 : f32 to vector<1x256xf32>
    %193 = arith.mulf %191, %192 : vector<1x256xf32>
    %194 = arith.addf %190, %193 : vector<1x256xf32>
    %195 = arith.addf %175, %194 : vector<1x256xf32>
    %c43 = arith.constant 43 : index
    %196 = memref.load %arg1[%c43] : memref<98xf32, #tpu.memory_space<smem>>
    %c92 = arith.constant 92 : index
    %197 = memref.load %arg1[%c92] : memref<98xf32, #tpu.memory_space<smem>>
    %c0_82 = arith.constant 0 : index
    %c102 = arith.constant 102 : index
    %198 = vector.load %arg6[%c0_82, %c102] : memref<1x384xf32, #tpu.memory_space<vmem>>, vector<1x256xf32>
    %199 = vector.broadcast %196 : f32 to vector<1x256xf32>
    %200 = arith.mulf %198, %199 : vector<1x256xf32>
    %c0_83 = arith.constant 0 : index
    %c102_84 = arith.constant 102 : index
    %201 = vector.load %arg7[%c0_83, %c102_84] : memref<1x384xf32, #tpu.memory_space<vmem>>, vector<1x256xf32>
    %202 = vector.broadcast %197 : f32 to vector<1x256xf32>
    %203 = arith.mulf %201, %202 : vector<1x256xf32>
    %204 = arith.addf %200, %203 : vector<1x256xf32>
    %205 = arith.addf %185, %204 : vector<1x256xf32>
    %c2_i32 = arith.constant 2 : i32
    %206 = vector.broadcast %c2_i32 : i32 to vector<1x256xi32>
    %207 = arith.cmpi sge, %50, %206 : vector<1x256xi32>
    %c15_i32_85 = arith.constant 15 : i32
    %208 = vector.broadcast %c15_i32_85 : i32 to vector<1x256xi32>
    %209 = arith.cmpi sle, %50, %208 : vector<1x256xi32>
    %210 = arith.andi %207, %209 : vector<1x256xi1>
    %211 = arith.addf %205, %195 : vector<1x256xf32>
    %cst_86 = arith.constant 0.000000e+00 : f32
    %212 = vector.broadcast %cst_86 : f32 to vector<1x256xf32>
    %213 = arith.select %210, %211, %212 : vector<1x256xi1>, vector<1x256xf32>
    %214 = arith.addf %52, %213 : vector<1x256xf32>
    %cst_87 = arith.constant 0.000000e+00 : f32
    %215 = vector.broadcast %cst_87 : f32 to vector<1x256xf32>
    %cst_88 = arith.constant 0.000000e+00 : f32
    %216 = vector.broadcast %cst_88 : f32 to vector<1x256xf32>
    %c2 = arith.constant 2 : index
    %217 = memref.load %arg1[%c2] : memref<98xf32, #tpu.memory_space<smem>>
    %c51 = arith.constant 51 : index
    %218 = memref.load %arg1[%c51] : memref<98xf32, #tpu.memory_space<smem>>
    %c0_89 = arith.constant 0 : index
    %c7_90 = arith.constant 7 : index
    %219 = vector.load %arg6[%c0_89, %c7_90] : memref<1x384xf32, #tpu.memory_space<vmem>>, vector<1x256xf32>
    %220 = vector.broadcast %217 : f32 to vector<1x256xf32>
    %221 = arith.mulf %219, %220 : vector<1x256xf32>
    %c0_91 = arith.constant 0 : index
    %c7_92 = arith.constant 7 : index
    %222 = vector.load %arg7[%c0_91, %c7_92] : memref<1x384xf32, #tpu.memory_space<vmem>>, vector<1x256xf32>
    %223 = vector.broadcast %218 : f32 to vector<1x256xf32>
    %224 = arith.mulf %222, %223 : vector<1x256xf32>
    %225 = arith.addf %221, %224 : vector<1x256xf32>
    %226 = arith.addf %215, %225 : vector<1x256xf32>
    %c9 = arith.constant 9 : index
    %227 = memref.load %arg1[%c9] : memref<98xf32, #tpu.memory_space<smem>>
    %c58 = arith.constant 58 : index
    %228 = memref.load %arg1[%c58] : memref<98xf32, #tpu.memory_space<smem>>
    %c0_93 = arith.constant 0 : index
    %c23 = arith.constant 23 : index
    %229 = vector.load %arg6[%c0_93, %c23] : memref<1x384xf32, #tpu.memory_space<vmem>>, vector<1x256xf32>
    %230 = vector.broadcast %227 : f32 to vector<1x256xf32>
    %231 = arith.mulf %229, %230 : vector<1x256xf32>
    %c0_94 = arith.constant 0 : index
    %c23_95 = arith.constant 23 : index
    %232 = vector.load %arg7[%c0_94, %c23_95] : memref<1x384xf32, #tpu.memory_space<vmem>>, vector<1x256xf32>
    %233 = vector.broadcast %228 : f32 to vector<1x256xf32>
    %234 = arith.mulf %232, %233 : vector<1x256xf32>
    %235 = arith.addf %231, %234 : vector<1x256xf32>
    %236 = arith.addf %216, %235 : vector<1x256xf32>
    %c16 = arith.constant 16 : index
    %237 = memref.load %arg1[%c16] : memref<98xf32, #tpu.memory_space<smem>>
    %c65 = arith.constant 65 : index
    %238 = memref.load %arg1[%c65] : memref<98xf32, #tpu.memory_space<smem>>
    %c0_96 = arith.constant 0 : index
    %c39 = arith.constant 39 : index
    %239 = vector.load %arg6[%c0_96, %c39] : memref<1x384xf32, #tpu.memory_space<vmem>>, vector<1x256xf32>
    %240 = vector.broadcast %237 : f32 to vector<1x256xf32>
    %241 = arith.mulf %239, %240 : vector<1x256xf32>
    %c0_97 = arith.constant 0 : index
    %c39_98 = arith.constant 39 : index
    %242 = vector.load %arg7[%c0_97, %c39_98] : memref<1x384xf32, #tpu.memory_space<vmem>>, vector<1x256xf32>
    %243 = vector.broadcast %238 : f32 to vector<1x256xf32>
    %244 = arith.mulf %242, %243 : vector<1x256xf32>
    %245 = arith.addf %241, %244 : vector<1x256xf32>
    %246 = arith.addf %226, %245 : vector<1x256xf32>
    %c23_99 = arith.constant 23 : index
    %247 = memref.load %arg1[%c23_99] : memref<98xf32, #tpu.memory_space<smem>>
    %c72 = arith.constant 72 : index
    %248 = memref.load %arg1[%c72] : memref<98xf32, #tpu.memory_space<smem>>
    %c0_100 = arith.constant 0 : index
    %c55 = arith.constant 55 : index
    %249 = vector.load %arg6[%c0_100, %c55] : memref<1x384xf32, #tpu.memory_space<vmem>>, vector<1x256xf32>
    %250 = vector.broadcast %247 : f32 to vector<1x256xf32>
    %251 = arith.mulf %249, %250 : vector<1x256xf32>
    %c0_101 = arith.constant 0 : index
    %c55_102 = arith.constant 55 : index
    %252 = vector.load %arg7[%c0_101, %c55_102] : memref<1x384xf32, #tpu.memory_space<vmem>>, vector<1x256xf32>
    %253 = vector.broadcast %248 : f32 to vector<1x256xf32>
    %254 = arith.mulf %252, %253 : vector<1x256xf32>
    %255 = arith.addf %251, %254 : vector<1x256xf32>
    %256 = arith.addf %236, %255 : vector<1x256xf32>
    %c30 = arith.constant 30 : index
    %257 = memref.load %arg1[%c30] : memref<98xf32, #tpu.memory_space<smem>>
    %c79 = arith.constant 79 : index
    %258 = memref.load %arg1[%c79] : memref<98xf32, #tpu.memory_space<smem>>
    %c0_103 = arith.constant 0 : index
    %c71_104 = arith.constant 71 : index
    %259 = vector.load %arg6[%c0_103, %c71_104] : memref<1x384xf32, #tpu.memory_space<vmem>>, vector<1x256xf32>
    %260 = vector.broadcast %257 : f32 to vector<1x256xf32>
    %261 = arith.mulf %259, %260 : vector<1x256xf32>
    %c0_105 = arith.constant 0 : index
    %c71_106 = arith.constant 71 : index
    %262 = vector.load %arg7[%c0_105, %c71_106] : memref<1x384xf32, #tpu.memory_space<vmem>>, vector<1x256xf32>
    %263 = vector.broadcast %258 : f32 to vector<1x256xf32>
    %264 = arith.mulf %262, %263 : vector<1x256xf32>
    %265 = arith.addf %261, %264 : vector<1x256xf32>
    %266 = arith.addf %246, %265 : vector<1x256xf32>
    %c37_107 = arith.constant 37 : index
    %267 = memref.load %arg1[%c37_107] : memref<98xf32, #tpu.memory_space<smem>>
    %c86_108 = arith.constant 86 : index
    %268 = memref.load %arg1[%c86_108] : memref<98xf32, #tpu.memory_space<smem>>
    %c0_109 = arith.constant 0 : index
    %c87 = arith.constant 87 : index
    %269 = vector.load %arg6[%c0_109, %c87] : memref<1x384xf32, #tpu.memory_space<vmem>>, vector<1x256xf32>
    %270 = vector.broadcast %267 : f32 to vector<1x256xf32>
    %271 = arith.mulf %269, %270 : vector<1x256xf32>
    %c0_110 = arith.constant 0 : index
    %c87_111 = arith.constant 87 : index
    %272 = vector.load %arg7[%c0_110, %c87_111] : memref<1x384xf32, #tpu.memory_space<vmem>>, vector<1x256xf32>
    %273 = vector.broadcast %268 : f32 to vector<1x256xf32>
    %274 = arith.mulf %272, %273 : vector<1x256xf32>
    %275 = arith.addf %271, %274 : vector<1x256xf32>
    %276 = arith.addf %256, %275 : vector<1x256xf32>
    %c44 = arith.constant 44 : index
    %277 = memref.load %arg1[%c44] : memref<98xf32, #tpu.memory_space<smem>>
    %c93 = arith.constant 93 : index
    %278 = memref.load %arg1[%c93] : memref<98xf32, #tpu.memory_space<smem>>
    %c0_112 = arith.constant 0 : index
    %c103 = arith.constant 103 : index
    %279 = vector.load %arg6[%c0_112, %c103] : memref<1x384xf32, #tpu.memory_space<vmem>>, vector<1x256xf32>
    %280 = vector.broadcast %277 : f32 to vector<1x256xf32>
    %281 = arith.mulf %279, %280 : vector<1x256xf32>
    %c0_113 = arith.constant 0 : index
    %c103_114 = arith.constant 103 : index
    %282 = vector.load %arg7[%c0_113, %c103_114] : memref<1x384xf32, #tpu.memory_space<vmem>>, vector<1x256xf32>
    %283 = vector.broadcast %278 : f32 to vector<1x256xf32>
    %284 = arith.mulf %282, %283 : vector<1x256xf32>
    %285 = arith.addf %281, %284 : vector<1x256xf32>
    %286 = arith.addf %266, %285 : vector<1x256xf32>
    %c1_i32_115 = arith.constant 1 : i32
    %287 = vector.broadcast %c1_i32_115 : i32 to vector<1x256xi32>
    %288 = arith.cmpi sge, %50, %287 : vector<1x256xi32>
    %c15_i32_116 = arith.constant 15 : i32
    %289 = vector.broadcast %c15_i32_116 : i32 to vector<1x256xi32>
    %290 = arith.cmpi sle, %50, %289 : vector<1x256xi32>
    %291 = arith.andi %288, %290 : vector<1x256xi1>
    %292 = arith.addf %286, %276 : vector<1x256xf32>
    %cst_117 = arith.constant 0.000000e+00 : f32
    %293 = vector.broadcast %cst_117 : f32 to vector<1x256xf32>
    %294 = arith.select %291, %292, %293 : vector<1x256xi1>, vector<1x256xf32>
    %295 = arith.addf %133, %294 : vector<1x256xf32>
    %cst_118 = arith.constant 0.000000e+00 : f32
    %296 = vector.broadcast %cst_118 : f32 to vector<1x256xf32>
    %cst_119 = arith.constant 0.000000e+00 : f32
    %297 = vector.broadcast %cst_119 : f32 to vector<1x256xf32>
    %c3 = arith.constant 3 : index
    %298 = memref.load %arg1[%c3] : memref<98xf32, #tpu.memory_space<smem>>
    %c52 = arith.constant 52 : index
    %299 = memref.load %arg1[%c52] : memref<98xf32, #tpu.memory_space<smem>>
    %c0_120 = arith.constant 0 : index
    %c8_121 = arith.constant 8 : index
    %300 = vector.load %arg6[%c0_120, %c8_121] : memref<1x384xf32, #tpu.memory_space<vmem>>, vector<1x256xf32>
    %301 = vector.broadcast %298 : f32 to vector<1x256xf32>
    %302 = arith.mulf %300, %301 : vector<1x256xf32>
    %c0_122 = arith.constant 0 : index
    %c8_123 = arith.constant 8 : index
    %303 = vector.load %arg7[%c0_122, %c8_123] : memref<1x384xf32, #tpu.memory_space<vmem>>, vector<1x256xf32>
    %304 = vector.broadcast %299 : f32 to vector<1x256xf32>
    %305 = arith.mulf %303, %304 : vector<1x256xf32>
    %306 = arith.addf %302, %305 : vector<1x256xf32>
    %307 = arith.addf %296, %306 : vector<1x256xf32>
    %c10 = arith.constant 10 : index
    %308 = memref.load %arg1[%c10] : memref<98xf32, #tpu.memory_space<smem>>
    %c59 = arith.constant 59 : index
    %309 = memref.load %arg1[%c59] : memref<98xf32, #tpu.memory_space<smem>>
    %c0_124 = arith.constant 0 : index
    %c24 = arith.constant 24 : index
    %310 = vector.load %arg6[%c0_124, %c24] : memref<1x384xf32, #tpu.memory_space<vmem>>, vector<1x256xf32>
    %311 = vector.broadcast %308 : f32 to vector<1x256xf32>
    %312 = arith.mulf %310, %311 : vector<1x256xf32>
    %c0_125 = arith.constant 0 : index
    %c24_126 = arith.constant 24 : index
    %313 = vector.load %arg7[%c0_125, %c24_126] : memref<1x384xf32, #tpu.memory_space<vmem>>, vector<1x256xf32>
    %314 = vector.broadcast %309 : f32 to vector<1x256xf32>
    %315 = arith.mulf %313, %314 : vector<1x256xf32>
    %316 = arith.addf %312, %315 : vector<1x256xf32>
    %317 = arith.addf %297, %316 : vector<1x256xf32>
    %c17 = arith.constant 17 : index
    %318 = memref.load %arg1[%c17] : memref<98xf32, #tpu.memory_space<smem>>
    %c66 = arith.constant 66 : index
    %319 = memref.load %arg1[%c66] : memref<98xf32, #tpu.memory_space<smem>>
    %c0_127 = arith.constant 0 : index
    %c40 = arith.constant 40 : index
    %320 = vector.load %arg6[%c0_127, %c40] : memref<1x384xf32, #tpu.memory_space<vmem>>, vector<1x256xf32>
    %321 = vector.broadcast %318 : f32 to vector<1x256xf32>
    %322 = arith.mulf %320, %321 : vector<1x256xf32>
    %c0_128 = arith.constant 0 : index
    %c40_129 = arith.constant 40 : index
    %323 = vector.load %arg7[%c0_128, %c40_129] : memref<1x384xf32, #tpu.memory_space<vmem>>, vector<1x256xf32>
    %324 = vector.broadcast %319 : f32 to vector<1x256xf32>
    %325 = arith.mulf %323, %324 : vector<1x256xf32>
    %326 = arith.addf %322, %325 : vector<1x256xf32>
    %327 = arith.addf %307, %326 : vector<1x256xf32>
    %c24_130 = arith.constant 24 : index
    %328 = memref.load %arg1[%c24_130] : memref<98xf32, #tpu.memory_space<smem>>
    %c73 = arith.constant 73 : index
    %329 = memref.load %arg1[%c73] : memref<98xf32, #tpu.memory_space<smem>>
    %c0_131 = arith.constant 0 : index
    %c56_132 = arith.constant 56 : index
    %330 = vector.load %arg6[%c0_131, %c56_132] : memref<1x384xf32, #tpu.memory_space<vmem>>, vector<1x256xf32>
    %331 = vector.broadcast %328 : f32 to vector<1x256xf32>
    %332 = arith.mulf %330, %331 : vector<1x256xf32>
    %c0_133 = arith.constant 0 : index
    %c56_134 = arith.constant 56 : index
    %333 = vector.load %arg7[%c0_133, %c56_134] : memref<1x384xf32, #tpu.memory_space<vmem>>, vector<1x256xf32>
    %334 = vector.broadcast %329 : f32 to vector<1x256xf32>
    %335 = arith.mulf %333, %334 : vector<1x256xf32>
    %336 = arith.addf %332, %335 : vector<1x256xf32>
    %337 = arith.addf %317, %336 : vector<1x256xf32>
    %c31 = arith.constant 31 : index
    %338 = memref.load %arg1[%c31] : memref<98xf32, #tpu.memory_space<smem>>
    %c80 = arith.constant 80 : index
    %339 = memref.load %arg1[%c80] : memref<98xf32, #tpu.memory_space<smem>>
    %c0_135 = arith.constant 0 : index
    %c72_136 = arith.constant 72 : index
    %340 = vector.load %arg6[%c0_135, %c72_136] : memref<1x384xf32, #tpu.memory_space<vmem>>, vector<1x256xf32>
    %341 = vector.broadcast %338 : f32 to vector<1x256xf32>
    %342 = arith.mulf %340, %341 : vector<1x256xf32>
    %c0_137 = arith.constant 0 : index
    %c72_138 = arith.constant 72 : index
    %343 = vector.load %arg7[%c0_137, %c72_138] : memref<1x384xf32, #tpu.memory_space<vmem>>, vector<1x256xf32>
    %344 = vector.broadcast %339 : f32 to vector<1x256xf32>
    %345 = arith.mulf %343, %344 : vector<1x256xf32>
    %346 = arith.addf %342, %345 : vector<1x256xf32>
    %347 = arith.addf %327, %346 : vector<1x256xf32>
    %c38_139 = arith.constant 38 : index
    %348 = memref.load %arg1[%c38_139] : memref<98xf32, #tpu.memory_space<smem>>
    %c87_140 = arith.constant 87 : index
    %349 = memref.load %arg1[%c87_140] : memref<98xf32, #tpu.memory_space<smem>>
    %c0_141 = arith.constant 0 : index
    %c88 = arith.constant 88 : index
    %350 = vector.load %arg6[%c0_141, %c88] : memref<1x384xf32, #tpu.memory_space<vmem>>, vector<1x256xf32>
    %351 = vector.broadcast %348 : f32 to vector<1x256xf32>
    %352 = arith.mulf %350, %351 : vector<1x256xf32>
    %c0_142 = arith.constant 0 : index
    %c88_143 = arith.constant 88 : index
    %353 = vector.load %arg7[%c0_142, %c88_143] : memref<1x384xf32, #tpu.memory_space<vmem>>, vector<1x256xf32>
    %354 = vector.broadcast %349 : f32 to vector<1x256xf32>
    %355 = arith.mulf %353, %354 : vector<1x256xf32>
    %356 = arith.addf %352, %355 : vector<1x256xf32>
    %357 = arith.addf %337, %356 : vector<1x256xf32>
    %c45 = arith.constant 45 : index
    %358 = memref.load %arg1[%c45] : memref<98xf32, #tpu.memory_space<smem>>
    %c94 = arith.constant 94 : index
    %359 = memref.load %arg1[%c94] : memref<98xf32, #tpu.memory_space<smem>>
    %c0_144 = arith.constant 0 : index
    %c104 = arith.constant 104 : index
    %360 = vector.load %arg6[%c0_144, %c104] : memref<1x384xf32, #tpu.memory_space<vmem>>, vector<1x256xf32>
    %361 = vector.broadcast %358 : f32 to vector<1x256xf32>
    %362 = arith.mulf %360, %361 : vector<1x256xf32>
    %c0_145 = arith.constant 0 : index
    %c104_146 = arith.constant 104 : index
    %363 = vector.load %arg7[%c0_145, %c104_146] : memref<1x384xf32, #tpu.memory_space<vmem>>, vector<1x256xf32>
    %364 = vector.broadcast %359 : f32 to vector<1x256xf32>
    %365 = arith.mulf %363, %364 : vector<1x256xf32>
    %366 = arith.addf %362, %365 : vector<1x256xf32>
    %367 = arith.addf %347, %366 : vector<1x256xf32>
    %c0_i32_147 = arith.constant 0 : i32
    %368 = vector.broadcast %c0_i32_147 : i32 to vector<1x256xi32>
    %369 = arith.cmpi sge, %50, %368 : vector<1x256xi32>
    %c15_i32_148 = arith.constant 15 : i32
    %370 = vector.broadcast %c15_i32_148 : i32 to vector<1x256xi32>
    %371 = arith.cmpi sle, %50, %370 : vector<1x256xi32>
    %372 = arith.andi %369, %371 : vector<1x256xi1>
    %373 = arith.addf %367, %357 : vector<1x256xf32>
    %cst_149 = arith.constant 0.000000e+00 : f32
    %374 = vector.broadcast %cst_149 : f32 to vector<1x256xf32>
    %375 = arith.select %372, %373, %374 : vector<1x256xi1>, vector<1x256xf32>
    %376 = arith.addf %214, %375 : vector<1x256xf32>
    %cst_150 = arith.constant 0.000000e+00 : f32
    %377 = vector.broadcast %cst_150 : f32 to vector<1x256xf32>
    %cst_151 = arith.constant 0.000000e+00 : f32
    %378 = vector.broadcast %cst_151 : f32 to vector<1x256xf32>
    %c4 = arith.constant 4 : index
    %379 = memref.load %arg1[%c4] : memref<98xf32, #tpu.memory_space<smem>>
    %c53_152 = arith.constant 53 : index
    %380 = memref.load %arg1[%c53_152] : memref<98xf32, #tpu.memory_space<smem>>
    %c0_153 = arith.constant 0 : index
    %c9_154 = arith.constant 9 : index
    %381 = vector.load %arg6[%c0_153, %c9_154] : memref<1x384xf32, #tpu.memory_space<vmem>>, vector<1x256xf32>
    %382 = vector.broadcast %379 : f32 to vector<1x256xf32>
    %383 = arith.mulf %381, %382 : vector<1x256xf32>
    %c0_155 = arith.constant 0 : index
    %c9_156 = arith.constant 9 : index
    %384 = vector.load %arg7[%c0_155, %c9_156] : memref<1x384xf32, #tpu.memory_space<vmem>>, vector<1x256xf32>
    %385 = vector.broadcast %380 : f32 to vector<1x256xf32>
    %386 = arith.mulf %384, %385 : vector<1x256xf32>
    %387 = arith.addf %383, %386 : vector<1x256xf32>
    %388 = arith.addf %377, %387 : vector<1x256xf32>
    %c11 = arith.constant 11 : index
    %389 = memref.load %arg1[%c11] : memref<98xf32, #tpu.memory_space<smem>>
    %c60 = arith.constant 60 : index
    %390 = memref.load %arg1[%c60] : memref<98xf32, #tpu.memory_space<smem>>
    %c0_157 = arith.constant 0 : index
    %c25 = arith.constant 25 : index
    %391 = vector.load %arg6[%c0_157, %c25] : memref<1x384xf32, #tpu.memory_space<vmem>>, vector<1x256xf32>
    %392 = vector.broadcast %389 : f32 to vector<1x256xf32>
    %393 = arith.mulf %391, %392 : vector<1x256xf32>
    %c0_158 = arith.constant 0 : index
    %c25_159 = arith.constant 25 : index
    %394 = vector.load %arg7[%c0_158, %c25_159] : memref<1x384xf32, #tpu.memory_space<vmem>>, vector<1x256xf32>
    %395 = vector.broadcast %390 : f32 to vector<1x256xf32>
    %396 = arith.mulf %394, %395 : vector<1x256xf32>
    %397 = arith.addf %393, %396 : vector<1x256xf32>
    %398 = arith.addf %378, %397 : vector<1x256xf32>
    %c18 = arith.constant 18 : index
    %399 = memref.load %arg1[%c18] : memref<98xf32, #tpu.memory_space<smem>>
    %c67 = arith.constant 67 : index
    %400 = memref.load %arg1[%c67] : memref<98xf32, #tpu.memory_space<smem>>
    %c0_160 = arith.constant 0 : index
    %c41 = arith.constant 41 : index
    %401 = vector.load %arg6[%c0_160, %c41] : memref<1x384xf32, #tpu.memory_space<vmem>>, vector<1x256xf32>
    %402 = vector.broadcast %399 : f32 to vector<1x256xf32>
    %403 = arith.mulf %401, %402 : vector<1x256xf32>
    %c0_161 = arith.constant 0 : index
    %c41_162 = arith.constant 41 : index
    %404 = vector.load %arg7[%c0_161, %c41_162] : memref<1x384xf32, #tpu.memory_space<vmem>>, vector<1x256xf32>
    %405 = vector.broadcast %400 : f32 to vector<1x256xf32>
    %406 = arith.mulf %404, %405 : vector<1x256xf32>
    %407 = arith.addf %403, %406 : vector<1x256xf32>
    %408 = arith.addf %388, %407 : vector<1x256xf32>
    %c25_163 = arith.constant 25 : index
    %409 = memref.load %arg1[%c25_163] : memref<98xf32, #tpu.memory_space<smem>>
    %c74 = arith.constant 74 : index
    %410 = memref.load %arg1[%c74] : memref<98xf32, #tpu.memory_space<smem>>
    %c0_164 = arith.constant 0 : index
    %c57_165 = arith.constant 57 : index
    %411 = vector.load %arg6[%c0_164, %c57_165] : memref<1x384xf32, #tpu.memory_space<vmem>>, vector<1x256xf32>
    %412 = vector.broadcast %409 : f32 to vector<1x256xf32>
    %413 = arith.mulf %411, %412 : vector<1x256xf32>
    %c0_166 = arith.constant 0 : index
    %c57_167 = arith.constant 57 : index
    %414 = vector.load %arg7[%c0_166, %c57_167] : memref<1x384xf32, #tpu.memory_space<vmem>>, vector<1x256xf32>
    %415 = vector.broadcast %410 : f32 to vector<1x256xf32>
    %416 = arith.mulf %414, %415 : vector<1x256xf32>
    %417 = arith.addf %413, %416 : vector<1x256xf32>
    %418 = arith.addf %398, %417 : vector<1x256xf32>
    %c32 = arith.constant 32 : index
    %419 = memref.load %arg1[%c32] : memref<98xf32, #tpu.memory_space<smem>>
    %c81 = arith.constant 81 : index
    %420 = memref.load %arg1[%c81] : memref<98xf32, #tpu.memory_space<smem>>
    %c0_168 = arith.constant 0 : index
    %c73_169 = arith.constant 73 : index
    %421 = vector.load %arg6[%c0_168, %c73_169] : memref<1x384xf32, #tpu.memory_space<vmem>>, vector<1x256xf32>
    %422 = vector.broadcast %419 : f32 to vector<1x256xf32>
    %423 = arith.mulf %421, %422 : vector<1x256xf32>
    %c0_170 = arith.constant 0 : index
    %c73_171 = arith.constant 73 : index
    %424 = vector.load %arg7[%c0_170, %c73_171] : memref<1x384xf32, #tpu.memory_space<vmem>>, vector<1x256xf32>
    %425 = vector.broadcast %420 : f32 to vector<1x256xf32>
    %426 = arith.mulf %424, %425 : vector<1x256xf32>
    %427 = arith.addf %423, %426 : vector<1x256xf32>
    %428 = arith.addf %408, %427 : vector<1x256xf32>
    %c39_172 = arith.constant 39 : index
    %429 = memref.load %arg1[%c39_172] : memref<98xf32, #tpu.memory_space<smem>>
    %c88_173 = arith.constant 88 : index
    %430 = memref.load %arg1[%c88_173] : memref<98xf32, #tpu.memory_space<smem>>
    %c0_174 = arith.constant 0 : index
    %c89 = arith.constant 89 : index
    %431 = vector.load %arg6[%c0_174, %c89] : memref<1x384xf32, #tpu.memory_space<vmem>>, vector<1x256xf32>
    %432 = vector.broadcast %429 : f32 to vector<1x256xf32>
    %433 = arith.mulf %431, %432 : vector<1x256xf32>
    %c0_175 = arith.constant 0 : index
    %c89_176 = arith.constant 89 : index
    %434 = vector.load %arg7[%c0_175, %c89_176] : memref<1x384xf32, #tpu.memory_space<vmem>>, vector<1x256xf32>
    %435 = vector.broadcast %430 : f32 to vector<1x256xf32>
    %436 = arith.mulf %434, %435 : vector<1x256xf32>
    %437 = arith.addf %433, %436 : vector<1x256xf32>
    %438 = arith.addf %418, %437 : vector<1x256xf32>
    %c46 = arith.constant 46 : index
    %439 = memref.load %arg1[%c46] : memref<98xf32, #tpu.memory_space<smem>>
    %c95 = arith.constant 95 : index
    %440 = memref.load %arg1[%c95] : memref<98xf32, #tpu.memory_space<smem>>
    %c0_177 = arith.constant 0 : index
    %c105 = arith.constant 105 : index
    %441 = vector.load %arg6[%c0_177, %c105] : memref<1x384xf32, #tpu.memory_space<vmem>>, vector<1x256xf32>
    %442 = vector.broadcast %439 : f32 to vector<1x256xf32>
    %443 = arith.mulf %441, %442 : vector<1x256xf32>
    %c0_178 = arith.constant 0 : index
    %c105_179 = arith.constant 105 : index
    %444 = vector.load %arg7[%c0_178, %c105_179] : memref<1x384xf32, #tpu.memory_space<vmem>>, vector<1x256xf32>
    %445 = vector.broadcast %440 : f32 to vector<1x256xf32>
    %446 = arith.mulf %444, %445 : vector<1x256xf32>
    %447 = arith.addf %443, %446 : vector<1x256xf32>
    %448 = arith.addf %428, %447 : vector<1x256xf32>
    %c0_i32_180 = arith.constant 0 : i32
    %449 = vector.broadcast %c0_i32_180 : i32 to vector<1x256xi32>
    %450 = arith.cmpi sge, %50, %449 : vector<1x256xi32>
    %c14_i32 = arith.constant 14 : i32
    %451 = vector.broadcast %c14_i32 : i32 to vector<1x256xi32>
    %452 = arith.cmpi sle, %50, %451 : vector<1x256xi32>
    %453 = arith.andi %450, %452 : vector<1x256xi1>
    %454 = arith.addf %448, %438 : vector<1x256xf32>
    %cst_181 = arith.constant 0.000000e+00 : f32
    %455 = vector.broadcast %cst_181 : f32 to vector<1x256xf32>
    %456 = arith.select %453, %454, %455 : vector<1x256xi1>, vector<1x256xf32>
    %457 = arith.addf %295, %456 : vector<1x256xf32>
    %cst_182 = arith.constant 0.000000e+00 : f32
    %458 = vector.broadcast %cst_182 : f32 to vector<1x256xf32>
    %cst_183 = arith.constant 0.000000e+00 : f32
    %459 = vector.broadcast %cst_183 : f32 to vector<1x256xf32>
    %c5_184 = arith.constant 5 : index
    %460 = memref.load %arg1[%c5_184] : memref<98xf32, #tpu.memory_space<smem>>
    %c54_185 = arith.constant 54 : index
    %461 = memref.load %arg1[%c54_185] : memref<98xf32, #tpu.memory_space<smem>>
    %c0_186 = arith.constant 0 : index
    %c10_187 = arith.constant 10 : index
    %462 = vector.load %arg6[%c0_186, %c10_187] : memref<1x384xf32, #tpu.memory_space<vmem>>, vector<1x256xf32>
    %463 = vector.broadcast %460 : f32 to vector<1x256xf32>
    %464 = arith.mulf %462, %463 : vector<1x256xf32>
    %c0_188 = arith.constant 0 : index
    %c10_189 = arith.constant 10 : index
    %465 = vector.load %arg7[%c0_188, %c10_189] : memref<1x384xf32, #tpu.memory_space<vmem>>, vector<1x256xf32>
    %466 = vector.broadcast %461 : f32 to vector<1x256xf32>
    %467 = arith.mulf %465, %466 : vector<1x256xf32>
    %468 = arith.addf %464, %467 : vector<1x256xf32>
    %469 = arith.addf %458, %468 : vector<1x256xf32>
    %c12 = arith.constant 12 : index
    %470 = memref.load %arg1[%c12] : memref<98xf32, #tpu.memory_space<smem>>
    %c61 = arith.constant 61 : index
    %471 = memref.load %arg1[%c61] : memref<98xf32, #tpu.memory_space<smem>>
    %c0_190 = arith.constant 0 : index
    %c26 = arith.constant 26 : index
    %472 = vector.load %arg6[%c0_190, %c26] : memref<1x384xf32, #tpu.memory_space<vmem>>, vector<1x256xf32>
    %473 = vector.broadcast %470 : f32 to vector<1x256xf32>
    %474 = arith.mulf %472, %473 : vector<1x256xf32>
    %c0_191 = arith.constant 0 : index
    %c26_192 = arith.constant 26 : index
    %475 = vector.load %arg7[%c0_191, %c26_192] : memref<1x384xf32, #tpu.memory_space<vmem>>, vector<1x256xf32>
    %476 = vector.broadcast %471 : f32 to vector<1x256xf32>
    %477 = arith.mulf %475, %476 : vector<1x256xf32>
    %478 = arith.addf %474, %477 : vector<1x256xf32>
    %479 = arith.addf %459, %478 : vector<1x256xf32>
    %c19 = arith.constant 19 : index
    %480 = memref.load %arg1[%c19] : memref<98xf32, #tpu.memory_space<smem>>
    %c68 = arith.constant 68 : index
    %481 = memref.load %arg1[%c68] : memref<98xf32, #tpu.memory_space<smem>>
    %c0_193 = arith.constant 0 : index
    %c42_194 = arith.constant 42 : index
    %482 = vector.load %arg6[%c0_193, %c42_194] : memref<1x384xf32, #tpu.memory_space<vmem>>, vector<1x256xf32>
    %483 = vector.broadcast %480 : f32 to vector<1x256xf32>
    %484 = arith.mulf %482, %483 : vector<1x256xf32>
    %c0_195 = arith.constant 0 : index
    %c42_196 = arith.constant 42 : index
    %485 = vector.load %arg7[%c0_195, %c42_196] : memref<1x384xf32, #tpu.memory_space<vmem>>, vector<1x256xf32>
    %486 = vector.broadcast %481 : f32 to vector<1x256xf32>
    %487 = arith.mulf %485, %486 : vector<1x256xf32>
    %488 = arith.addf %484, %487 : vector<1x256xf32>
    %489 = arith.addf %469, %488 : vector<1x256xf32>
    %c26_197 = arith.constant 26 : index
    %490 = memref.load %arg1[%c26_197] : memref<98xf32, #tpu.memory_space<smem>>
    %c75 = arith.constant 75 : index
    %491 = memref.load %arg1[%c75] : memref<98xf32, #tpu.memory_space<smem>>
    %c0_198 = arith.constant 0 : index
    %c58_199 = arith.constant 58 : index
    %492 = vector.load %arg6[%c0_198, %c58_199] : memref<1x384xf32, #tpu.memory_space<vmem>>, vector<1x256xf32>
    %493 = vector.broadcast %490 : f32 to vector<1x256xf32>
    %494 = arith.mulf %492, %493 : vector<1x256xf32>
    %c0_200 = arith.constant 0 : index
    %c58_201 = arith.constant 58 : index
    %495 = vector.load %arg7[%c0_200, %c58_201] : memref<1x384xf32, #tpu.memory_space<vmem>>, vector<1x256xf32>
    %496 = vector.broadcast %491 : f32 to vector<1x256xf32>
    %497 = arith.mulf %495, %496 : vector<1x256xf32>
    %498 = arith.addf %494, %497 : vector<1x256xf32>
    %499 = arith.addf %479, %498 : vector<1x256xf32>
    %c33 = arith.constant 33 : index
    %500 = memref.load %arg1[%c33] : memref<98xf32, #tpu.memory_space<smem>>
    %c82 = arith.constant 82 : index
    %501 = memref.load %arg1[%c82] : memref<98xf32, #tpu.memory_space<smem>>
    %c0_202 = arith.constant 0 : index
    %c74_203 = arith.constant 74 : index
    %502 = vector.load %arg6[%c0_202, %c74_203] : memref<1x384xf32, #tpu.memory_space<vmem>>, vector<1x256xf32>
    %503 = vector.broadcast %500 : f32 to vector<1x256xf32>
    %504 = arith.mulf %502, %503 : vector<1x256xf32>
    %c0_204 = arith.constant 0 : index
    %c74_205 = arith.constant 74 : index
    %505 = vector.load %arg7[%c0_204, %c74_205] : memref<1x384xf32, #tpu.memory_space<vmem>>, vector<1x256xf32>
    %506 = vector.broadcast %501 : f32 to vector<1x256xf32>
    %507 = arith.mulf %505, %506 : vector<1x256xf32>
    %508 = arith.addf %504, %507 : vector<1x256xf32>
    %509 = arith.addf %489, %508 : vector<1x256xf32>
    %c40_206 = arith.constant 40 : index
    %510 = memref.load %arg1[%c40_206] : memref<98xf32, #tpu.memory_space<smem>>
    %c89_207 = arith.constant 89 : index
    %511 = memref.load %arg1[%c89_207] : memref<98xf32, #tpu.memory_space<smem>>
    %c0_208 = arith.constant 0 : index
    %c90 = arith.constant 90 : index
    %512 = vector.load %arg6[%c0_208, %c90] : memref<1x384xf32, #tpu.memory_space<vmem>>, vector<1x256xf32>
    %513 = vector.broadcast %510 : f32 to vector<1x256xf32>
    %514 = arith.mulf %512, %513 : vector<1x256xf32>
    %c0_209 = arith.constant 0 : index
    %c90_210 = arith.constant 90 : index
    %515 = vector.load %arg7[%c0_209, %c90_210] : memref<1x384xf32, #tpu.memory_space<vmem>>, vector<1x256xf32>
    %516 = vector.broadcast %511 : f32 to vector<1x256xf32>
    %517 = arith.mulf %515, %516 : vector<1x256xf32>
    %518 = arith.addf %514, %517 : vector<1x256xf32>
    %519 = arith.addf %499, %518 : vector<1x256xf32>
    %c47 = arith.constant 47 : index
    %520 = memref.load %arg1[%c47] : memref<98xf32, #tpu.memory_space<smem>>
    %c96 = arith.constant 96 : index
    %521 = memref.load %arg1[%c96] : memref<98xf32, #tpu.memory_space<smem>>
    %c0_211 = arith.constant 0 : index
    %c106 = arith.constant 106 : index
    %522 = vector.load %arg6[%c0_211, %c106] : memref<1x384xf32, #tpu.memory_space<vmem>>, vector<1x256xf32>
    %523 = vector.broadcast %520 : f32 to vector<1x256xf32>
    %524 = arith.mulf %522, %523 : vector<1x256xf32>
    %c0_212 = arith.constant 0 : index
    %c106_213 = arith.constant 106 : index
    %525 = vector.load %arg7[%c0_212, %c106_213] : memref<1x384xf32, #tpu.memory_space<vmem>>, vector<1x256xf32>
    %526 = vector.broadcast %521 : f32 to vector<1x256xf32>
    %527 = arith.mulf %525, %526 : vector<1x256xf32>
    %528 = arith.addf %524, %527 : vector<1x256xf32>
    %529 = arith.addf %509, %528 : vector<1x256xf32>
    %c0_i32_214 = arith.constant 0 : i32
    %530 = vector.broadcast %c0_i32_214 : i32 to vector<1x256xi32>
    %531 = arith.cmpi sge, %50, %530 : vector<1x256xi32>
    %c13_i32 = arith.constant 13 : i32
    %532 = vector.broadcast %c13_i32 : i32 to vector<1x256xi32>
    %533 = arith.cmpi sle, %50, %532 : vector<1x256xi32>
    %534 = arith.andi %531, %533 : vector<1x256xi1>
    %535 = arith.addf %529, %519 : vector<1x256xf32>
    %cst_215 = arith.constant 0.000000e+00 : f32
    %536 = vector.broadcast %cst_215 : f32 to vector<1x256xf32>
    %537 = arith.select %534, %535, %536 : vector<1x256xi1>, vector<1x256xf32>
    %538 = arith.addf %376, %537 : vector<1x256xf32>
    %cst_216 = arith.constant 0.000000e+00 : f32
    %539 = vector.broadcast %cst_216 : f32 to vector<1x256xf32>
    %cst_217 = arith.constant 0.000000e+00 : f32
    %540 = vector.broadcast %cst_217 : f32 to vector<1x256xf32>
    %c6_218 = arith.constant 6 : index
    %541 = memref.load %arg1[%c6_218] : memref<98xf32, #tpu.memory_space<smem>>
    %c55_219 = arith.constant 55 : index
    %542 = memref.load %arg1[%c55_219] : memref<98xf32, #tpu.memory_space<smem>>
    %c0_220 = arith.constant 0 : index
    %c11_221 = arith.constant 11 : index
    %543 = vector.load %arg6[%c0_220, %c11_221] : memref<1x384xf32, #tpu.memory_space<vmem>>, vector<1x256xf32>
    %544 = vector.broadcast %541 : f32 to vector<1x256xf32>
    %545 = arith.mulf %543, %544 : vector<1x256xf32>
    %c0_222 = arith.constant 0 : index
    %c11_223 = arith.constant 11 : index
    %546 = vector.load %arg7[%c0_222, %c11_223] : memref<1x384xf32, #tpu.memory_space<vmem>>, vector<1x256xf32>
    %547 = vector.broadcast %542 : f32 to vector<1x256xf32>
    %548 = arith.mulf %546, %547 : vector<1x256xf32>
    %549 = arith.addf %545, %548 : vector<1x256xf32>
    %550 = arith.addf %539, %549 : vector<1x256xf32>
    %c13 = arith.constant 13 : index
    %551 = memref.load %arg1[%c13] : memref<98xf32, #tpu.memory_space<smem>>
    %c62 = arith.constant 62 : index
    %552 = memref.load %arg1[%c62] : memref<98xf32, #tpu.memory_space<smem>>
    %c0_224 = arith.constant 0 : index
    %c27 = arith.constant 27 : index
    %553 = vector.load %arg6[%c0_224, %c27] : memref<1x384xf32, #tpu.memory_space<vmem>>, vector<1x256xf32>
    %554 = vector.broadcast %551 : f32 to vector<1x256xf32>
    %555 = arith.mulf %553, %554 : vector<1x256xf32>
    %c0_225 = arith.constant 0 : index
    %c27_226 = arith.constant 27 : index
    %556 = vector.load %arg7[%c0_225, %c27_226] : memref<1x384xf32, #tpu.memory_space<vmem>>, vector<1x256xf32>
    %557 = vector.broadcast %552 : f32 to vector<1x256xf32>
    %558 = arith.mulf %556, %557 : vector<1x256xf32>
    %559 = arith.addf %555, %558 : vector<1x256xf32>
    %560 = arith.addf %540, %559 : vector<1x256xf32>
    %c20 = arith.constant 20 : index
    %561 = memref.load %arg1[%c20] : memref<98xf32, #tpu.memory_space<smem>>
    %c69_227 = arith.constant 69 : index
    %562 = memref.load %arg1[%c69_227] : memref<98xf32, #tpu.memory_space<smem>>
    %c0_228 = arith.constant 0 : index
    %c43_229 = arith.constant 43 : index
    %563 = vector.load %arg6[%c0_228, %c43_229] : memref<1x384xf32, #tpu.memory_space<vmem>>, vector<1x256xf32>
    %564 = vector.broadcast %561 : f32 to vector<1x256xf32>
    %565 = arith.mulf %563, %564 : vector<1x256xf32>
    %c0_230 = arith.constant 0 : index
    %c43_231 = arith.constant 43 : index
    %566 = vector.load %arg7[%c0_230, %c43_231] : memref<1x384xf32, #tpu.memory_space<vmem>>, vector<1x256xf32>
    %567 = vector.broadcast %562 : f32 to vector<1x256xf32>
    %568 = arith.mulf %566, %567 : vector<1x256xf32>
    %569 = arith.addf %565, %568 : vector<1x256xf32>
    %570 = arith.addf %550, %569 : vector<1x256xf32>
    %c27_232 = arith.constant 27 : index
    %571 = memref.load %arg1[%c27_232] : memref<98xf32, #tpu.memory_space<smem>>
    %c76 = arith.constant 76 : index
    %572 = memref.load %arg1[%c76] : memref<98xf32, #tpu.memory_space<smem>>
    %c0_233 = arith.constant 0 : index
    %c59_234 = arith.constant 59 : index
    %573 = vector.load %arg6[%c0_233, %c59_234] : memref<1x384xf32, #tpu.memory_space<vmem>>, vector<1x256xf32>
    %574 = vector.broadcast %571 : f32 to vector<1x256xf32>
    %575 = arith.mulf %573, %574 : vector<1x256xf32>
    %c0_235 = arith.constant 0 : index
    %c59_236 = arith.constant 59 : index
    %576 = vector.load %arg7[%c0_235, %c59_236] : memref<1x384xf32, #tpu.memory_space<vmem>>, vector<1x256xf32>
    %577 = vector.broadcast %572 : f32 to vector<1x256xf32>
    %578 = arith.mulf %576, %577 : vector<1x256xf32>
    %579 = arith.addf %575, %578 : vector<1x256xf32>
    %580 = arith.addf %560, %579 : vector<1x256xf32>
    %c34 = arith.constant 34 : index
    %581 = memref.load %arg1[%c34] : memref<98xf32, #tpu.memory_space<smem>>
    %c83 = arith.constant 83 : index
    %582 = memref.load %arg1[%c83] : memref<98xf32, #tpu.memory_space<smem>>
    %c0_237 = arith.constant 0 : index
    %c75_238 = arith.constant 75 : index
    %583 = vector.load %arg6[%c0_237, %c75_238] : memref<1x384xf32, #tpu.memory_space<vmem>>, vector<1x256xf32>
    %584 = vector.broadcast %581 : f32 to vector<1x256xf32>
    %585 = arith.mulf %583, %584 : vector<1x256xf32>
    %c0_239 = arith.constant 0 : index
    %c75_240 = arith.constant 75 : index
    %586 = vector.load %arg7[%c0_239, %c75_240] : memref<1x384xf32, #tpu.memory_space<vmem>>, vector<1x256xf32>
    %587 = vector.broadcast %582 : f32 to vector<1x256xf32>
    %588 = arith.mulf %586, %587 : vector<1x256xf32>
    %589 = arith.addf %585, %588 : vector<1x256xf32>
    %590 = arith.addf %570, %589 : vector<1x256xf32>
    %c41_241 = arith.constant 41 : index
    %591 = memref.load %arg1[%c41_241] : memref<98xf32, #tpu.memory_space<smem>>
    %c90_242 = arith.constant 90 : index
    %592 = memref.load %arg1[%c90_242] : memref<98xf32, #tpu.memory_space<smem>>
    %c0_243 = arith.constant 0 : index
    %c91_244 = arith.constant 91 : index
    %593 = vector.load %arg6[%c0_243, %c91_244] : memref<1x384xf32, #tpu.memory_space<vmem>>, vector<1x256xf32>
    %594 = vector.broadcast %591 : f32 to vector<1x256xf32>
    %595 = arith.mulf %593, %594 : vector<1x256xf32>
    %c0_245 = arith.constant 0 : index
    %c91_246 = arith.constant 91 : index
    %596 = vector.load %arg7[%c0_245, %c91_246] : memref<1x384xf32, #tpu.memory_space<vmem>>, vector<1x256xf32>
    %597 = vector.broadcast %592 : f32 to vector<1x256xf32>
    %598 = arith.mulf %596, %597 : vector<1x256xf32>
    %599 = arith.addf %595, %598 : vector<1x256xf32>
    %600 = arith.addf %580, %599 : vector<1x256xf32>
    %c48 = arith.constant 48 : index
    %601 = memref.load %arg1[%c48] : memref<98xf32, #tpu.memory_space<smem>>
    %c97 = arith.constant 97 : index
    %602 = memref.load %arg1[%c97] : memref<98xf32, #tpu.memory_space<smem>>
    %c0_247 = arith.constant 0 : index
    %c107 = arith.constant 107 : index
    %603 = vector.load %arg6[%c0_247, %c107] : memref<1x384xf32, #tpu.memory_space<vmem>>, vector<1x256xf32>
    %604 = vector.broadcast %601 : f32 to vector<1x256xf32>
    %605 = arith.mulf %603, %604 : vector<1x256xf32>
    %c0_248 = arith.constant 0 : index
    %c107_249 = arith.constant 107 : index
    %606 = vector.load %arg7[%c0_248, %c107_249] : memref<1x384xf32, #tpu.memory_space<vmem>>, vector<1x256xf32>
    %607 = vector.broadcast %602 : f32 to vector<1x256xf32>
    %608 = arith.mulf %606, %607 : vector<1x256xf32>
    %609 = arith.addf %605, %608 : vector<1x256xf32>
    %610 = arith.addf %590, %609 : vector<1x256xf32>
    %c0_i32_250 = arith.constant 0 : i32
    %611 = vector.broadcast %c0_i32_250 : i32 to vector<1x256xi32>
    %612 = arith.cmpi sge, %50, %611 : vector<1x256xi32>
    %c12_i32 = arith.constant 12 : i32
    %613 = vector.broadcast %c12_i32 : i32 to vector<1x256xi32>
    %614 = arith.cmpi sle, %50, %613 : vector<1x256xi32>
    %615 = arith.andi %612, %614 : vector<1x256xi1>
    %616 = arith.addf %610, %600 : vector<1x256xf32>
    %cst_251 = arith.constant 0.000000e+00 : f32
    %617 = vector.broadcast %cst_251 : f32 to vector<1x256xf32>
    %618 = arith.select %615, %616, %617 : vector<1x256xi1>, vector<1x256xf32>
    %619 = arith.addf %457, %618 : vector<1x256xf32>
    %620 = arith.addf %619, %538 : vector<1x256xf32>
    %621 = arith.negf %620 : vector<1x256xf32>
    %622 = math.exp %621 : vector<1x256xf32>
    %cst_252 = arith.constant 1.000000e+00 : f32
    %623 = vector.broadcast %cst_252 : f32 to vector<1x256xf32>
    %624 = arith.addf %623, %622 : vector<1x256xf32>
    %625 = arith.divf %623, %624 : vector<1x256xf32>
    %626 = vector.shape_cast %625 : vector<1x256xf32> to vector<1x1x256xf32>
    %627 = vector.broadcast %626 : vector<1x1x256xf32> to vector<1x16x256xf32>
    %628 = arith.mulf %23, %627 : vector<1x16x256xf32>
    %c0_253 = arith.constant 0 : index
    %c0_254 = arith.constant 0 : index
    %c0_255 = arith.constant 0 : index
    %629 = vector.load %arg5[%c0_253, %c0_254, %c0_255] : memref<1x16x256xf32, #tpu.memory_space<vmem>>, vector<1x16x256xf32>
    tpu.vector_store %arg5[%c0_253, %c0_254, %c0_255], %628 {strides = array<i32>} : memref<1x16x256xf32, #tpu.memory_space<vmem>>, vector<1x16x256xf32>,
    return
  }
  func.func @transform_0(%arg0: i32) -> i32 {
    %c0_i32 = arith.constant 0 : i32
    %c0_i32_0 = arith.constant 0 : i32
    return %c0_i32 : i32
  }
  func.func @transform_1(%arg0: i32) -> (i32, i32, i32) {
    %c0_i32 = arith.constant 0 : i32
    %c0_i32_0 = arith.constant 0 : i32
    %c0_i32_1 = arith.constant 0 : i32
    return %arg0, %c0_i32, %c0_i32_0 : i32, i32, i32
  }
  func.func @transform_2(%arg0: i32) -> (i32, i32) {
    %c0_i32 = arith.constant 0 : i32
    %c0_i32_0 = arith.constant 0 : i32
    %c0_i32_1 = arith.constant 0 : i32
    return %c0_i32, %c0_i32_0 : i32, i32
  }
  func.func @transform_3(%arg0: i32) -> (i32, i32) {
    %c0_i32 = arith.constant 0 : i32
    %c0_i32_0 = arith.constant 0 : i32
    %c0_i32_1 = arith.constant 0 : i32
    return %c0_i32, %c0_i32_0 : i32, i32
  }
  func.func @transform_4(%arg0: i32) -> (i32, i32, i32) {
    %c0_i32 = arith.constant 0 : i32
    %c0_i32_0 = arith.constant 0 : i32
    %c0_i32_1 = arith.constant 0 : i32
    return %arg0, %c0_i32, %c0_i32_0 : i32, i32, i32
  }
}

</mosaic_0001>

<llo_original>
// kernel: tpu_custom_call.1
$region0: #{tpu_custom_call.1}
  #allocation0 [shape = 'u32[]', space=smem, size = 0x4, offset = 0x4, fixed_abs, tag = 'smem constant byte address 0x4 - core index']
  #allocation1 [shape = 'u32[72,128]{1,0:T(1,128)}', space=vmem, size = 0x9000, scoped, tag = 'internal scratch']
  #allocation2 [shape = 'f32[1,384]{1,0:T(1,128)}', space=vmem, size = 0x600, scoped, tag = 'scratch operand']
  #allocation3 [shape = 'f32[1,384]{1,0:T(1,128)}', space=vmem, size = 0x600, scoped, tag = 'scratch operand']
  %s0 = inlined_call_operand.vmem [shape: f32[98], index: 0, kind: input, shape index: {}]
  %s1 = inlined_call_operand.hbm [shape: f32[2,16,256], index: 1, kind: input, shape index: {}]
  %s2 = inlined_call_operand.vmem [shape: f32[16,2], index: 2, kind: input, shape index: {}]
  %s3 = inlined_call_operand.vmem [shape: f32[2,16], index: 3, kind: input, shape index: {}]
  %s4 = inlined_call_operand.hbm [shape: f32[2,16,256], index: 4, kind: output, shape index: {}]
  %s5 = sld [smem:[#allocation0]]
  $region57: #{tpu_custom_call.1} parent=0
    _
  %s7 = ssub.s32 1, %s5
  %s8 = scalar_select 0, %s7, %s5
  $region1: #{tpu_custom_call.1} parent=0
    #allocation4 [shape = 'u8[512]{0}', space=smem, size = 0x200, scoped, tag = 'input window, operand 0, single buffered']
    #allocation5 [shape = 's32[2]{0}', space=sflag, size = 0x8, scoped, tag = 'scoped memory for tpu_custom_call.1']
    #allocation6 [shape = 's32[2]{0}', space=sflag, size = 0x8, scoped, tag = 'scoped memory for tpu_custom_call.1']
    #allocation7 [shape = 's32[2]{0}', space=sflag, size = 0x8, scoped, tag = 'scoped memory for tpu_custom_call.1']
    #allocation8 [shape = 'u8[32768]{0}', space=vmem, size = 0x8000, scoped, tag = 'input window, operand 1']
    #allocation9 [shape = 'u8[32768]{0}', space=vmem, size = 0x8000, scoped, tag = 'output window, operand 0']
    %9 = vsyncpa [#allocation7], 0
    %10 = vsyncpa [#allocation5], 0
    %s11 = scalar_lea.sflag [#allocation5], 1
    %12 = vsyncpa %s11, 0
    %13 = vsyncpa [#allocation6], 0
    %s14 = scalar_lea.sflag [#allocation6], 1
    %15 = vsyncpa %s14, 0
    loop: start=0, step=1, limit=4
    $region2: #{tpu_custom_call.1} parent=1 // loop_pre_header
      _
    $region3: #{tpu_custom_call.1} parent=1 // loop_header
      %s17 = sphi 0, %s21
      %p18 = scmp.ge.s32.totalorder %s17, 4
      %s25 = sphi 0, %s25
      %s27 = sphi 0, %s25
      %s28 = sphi 0, %s27
      %s42 = sphi 0, %s28
      %s48 = sphi 0, %s50
      %s51 = sphi 0, %s48
      %s52 = sphi 0, %s51
      %s68 = sphi 0, %s52
      %s72 = sphi 0, %s72
      %s74 = sphi 0, %s72
      %s75 = sphi 0, %s74
      %s89 = sphi 0, %s75
      %s93 = sphi 0, %s93
      %s95 = sphi 0, %s93
      %s96 = sphi 0, %s95
      %s110 = sphi 0, %s96
      %s116 = sphi 0, %s118
      %s119 = sphi 0, %s116
      %s120 = sphi 0, %s119
      %s136 = sphi 0, %s120
    $region4: #{tpu_custom_call.1} parent=1 // loop_header_branch
      %20 = sbr.rel (%p18) target = $region8
    $region5: #{tpu_custom_call.1} parent=1 // loop_body
      %s22 = ssub.s32 %s17, 1
      %s23 = ssub.s32 %s17, 2
      %s24 = sadd.s32 %s17, 1
      %s26 = sadd.s32 %s25, 1
      %p29 = scmp.eq.s32.totalorder %s17, 1
      %p30 = scmp.ne.s32.totalorder %s25, %s27
      %p31 = scmp.eq.s32.totalorder %s17, 0
      %p32 = por %p30, %p31
      %p33 = scmp.ne.s32.totalorder %s25, %s27
      %p34 = scmp.eq.s32.totalorder %s22, 1
      %p35 = por %p33, %p34
      %p36 = scmp.ne.s32.totalorder %s27, %s28
      %p37 = scmp.eq.s32.totalorder %s22, 0
      %p38 = por %p36, %p37
      %p39 = scmp.ne.s32.totalorder %s27, %s28
      %p40 = scmp.eq.s32.totalorder %s23, 1
      %p41 = por %p39, %p40
      %p43 = scmp.ne.s32.totalorder %s28, %s42
      %p44 = scmp.eq.s32.totalorder %s23, 0
      %p45 = por %p43, %p44
      %s46 = ssub.s32 %s17, %s24
      %p47 = scmp.eq.s32.totalorder %s46, 0
      %s49 = sadd.s32 %s48, 1
      %s50 = scalar_select %p47, %s48, %s49
      %p53 = pneg %p47
      %p54 = scmp.eq.s32.totalorder %s17, 1
      %p55 = por %p53, %p54
      %p56 = scmp.ne.s32.totalorder %s48, %s51
      %p57 = scmp.eq.s32.totalorder %s17, 0
      %p58 = por %p56, %p57
      %p59 = scmp.ne.s32.totalorder %s48, %s51
      %p60 = scmp.eq.s32.totalorder %s22, 1
      %p61 = por %p59, %p60
      %p62 = scmp.ne.s32.totalorder %s51, %s52
      %p63 = scmp.eq.s32.totalorder %s22, 0
      %p64 = por %p62, %p63
      %p65 = scmp.ne.s32.totalorder %s51, %s52
      %p66 = scmp.eq.s32.totalorder %s23, 1
      %p67 = por %p65, %p66
      %p69 = scmp.ne.s32.totalorder %s52, %s68
      %p70 = scmp.eq.s32.totalorder %s23, 0
      %p71 = por %p69, %p70
      %s73 = sadd.s32 %s72, 1
      %p76 = scmp.eq.s32.totalorder %s17, 1
      %p77 = scmp.ne.s32.totalorder %s72, %s74
      %p78 = scmp.eq.s32.totalorder %s17, 0
      %p79 = por %p77, %p78
      %p80 = scmp.ne.s32.totalorder %s72, %s74
      %p81 = scmp.eq.s32.totalorder %s22, 1
      %p82 = por %p80, %p81
      %p83 = scmp.ne.s32.totalorder %s74, %s75
      %p84 = scmp.eq.s32.totalorder %s22, 0
      %p85 = por %p83, %p84
      %p86 = scmp.ne.s32.totalorder %s74, %s75
      %p87 = scmp.eq.s32.totalorder %s23, 1
      %p88 = por %p86, %p87
      %p90 = scmp.ne.s32.totalorder %s75, %s89
      %p91 = scmp.eq.s32.totalorder %s23, 0
      %p92 = por %p90, %p91
      %s94 = sadd.s32 %s93, 1
      %p97 = scmp.eq.s32.totalorder %s17, 1
      %p98 = scmp.ne.s32.totalorder %s93, %s95
      %p99 = scmp.eq.s32.totalorder %s17, 0
      %p100 = por %p98, %p99
      %p101 = scmp.ne.s32.totalorder %s93, %s95
      %p102 = scmp.eq.s32.totalorder %s22, 1
      %p103 = por %p101, %p102
      %p104 = scmp.ne.s32.totalorder %s95, %s96
      %p105 = scmp.eq.s32.totalorder %s22, 0
      %p106 = por %p104, %p105
      %p107 = scmp.ne.s32.totalorder %s95, %s96
      %p108 = scmp.eq.s32.totalorder %s23, 1
      %p109 = por %p107, %p108
      %p111 = scmp.ne.s32.totalorder %s96, %s110
      %p112 = scmp.eq.s32.totalorder %s23, 0
      %p113 = por %p111, %p112
      %s114 = ssub.s32 %s17, %s24
      %p115 = scmp.eq.s32.totalorder %s114, 0
      %s117 = sadd.s32 %s116, 1
      %s118 = scalar_select %p115, %s116, %s117
      %p121 = pneg %p115
      %p122 = scmp.eq.s32.totalorder %s17, 1
      %p123 = por %p121, %p122
      %p124 = scmp.ne.s32.totalorder %s116, %s119
      %p125 = scmp.eq.s32.totalorder %s17, 0
      %p126 = por %p124, %p125
      %p127 = scmp.ne.s32.totalorder %s116, %s119
      %p128 = scmp.eq.s32.totalorder %s22, 1
      %p129 = por %p127, %p128
      %p130 = scmp.ne.s32.totalorder %s119, %s120
      %p131 = scmp.eq.s32.totalorder %s22, 0
      %p132 = por %p130, %p131
      %p133 = scmp.ne.s32.totalorder %s119, %s120
      %p134 = scmp.eq.s32.totalorder %s23, 1
      %p135 = por %p133, %p134
      %p137 = scmp.ne.s32.totalorder %s120, %s136
      %p138 = scmp.eq.s32.totalorder %s23, 0
      %p139 = por %p137, %p138
      %p140 = scmp.le.s32.totalorder 1, %s17
      %p141 = scmp.lt.s32.totalorder %s17, 3
      %p142 = pnand %p140, %p141
      %p143 = pneg %p142
      // Predicated region
      $region9: #{tpu_custom_call.1} parent=5 // pred_check
        _
      $region10: #{tpu_custom_call.1} parent=5 // pred_check_branch
        %145 = sbr.rel (%p142) target = $region12
      $region11: #{tpu_custom_call.1} parent=5 // pred_region
        %s146 = ssub.s32 %s17, 1
        // Predicated region
        $region13: #{tpu_custom_call.1} parent=11 // pred_check
          %p147 = pneg %p38
        $region14: #{tpu_custom_call.1} parent=11 // pred_check_branch
          %149 = sbr.rel (%p147) target = $region16
        $region15: #{tpu_custom_call.1} parent=11 // pred_region
          %151 = vsyncadd [#allocation7], 0
          %s153 = sshll.u32 %s0, 4
          %s154 = int_to_ptr.vmem [resolvable:$true] %s153
          %156 = dma.vmem_to_smem %s154, 16, [#allocation4], [#allocation7]
        $region16: #{tpu_custom_call.1} parent=11 // pred_fallthru
          _
        // Predicated region
        $region17: #{tpu_custom_call.1} parent=11 // pred_check
          %p157 = pneg %p85
        $region18: #{tpu_custom_call.1} parent=11 // pred_check_branch
          %159 = sbr.rel (%p157) target = $region20
        $region19: #{tpu_custom_call.1} parent=11 // pred_region
          _
        $region20: #{tpu_custom_call.1} parent=11 // pred_fallthru
          _
        // Predicated region
        $region21: #{tpu_custom_call.1} parent=11 // pred_check
          %p160 = pneg %p106
        $region22: #{tpu_custom_call.1} parent=11 // pred_check_branch
          %162 = sbr.rel (%p160) target = $region24
        $region23: #{tpu_custom_call.1} parent=11 // pred_region
          _
        $region24: #{tpu_custom_call.1} parent=11 // pred_fallthru
          _
      $region12: #{tpu_custom_call.1} parent=5 // pred_fallthru
        _
      %p163 = scmp.lt.s32.totalorder %s17, 2
      // Predicated region
      $region25: #{tpu_custom_call.1} parent=5 // pred_check
        %p164 = pneg %p163
      $region26: #{tpu_custom_call.1} parent=5 // pred_check_branch
        %166 = sbr.rel (%p164) target = $region28
      $region27: #{tpu_custom_call.1} parent=5 // pred_region
        // Predicated region
        $region29: #{tpu_custom_call.1} parent=27 // pred_check
          %p167 = pneg %p58
        $region30: #{tpu_custom_call.1} parent=27 // pred_check_branch
          %169 = sbr.rel (%p167) target = $region32
        $region31: #{tpu_custom_call.1} parent=27 // pred_region
          %s170 = sand.u32 %s48, 1
          %s171 = scalar_lea.sflag [#allocation5], %s170
          %s172 = sand.u32 %s48, 1
          %s173 = smul.addr %s172, 32
          %s174 = scalar_lea.vmem [#allocation8], %s173
          %176 = vsyncadd %s171, 0
          %s177 = smul.addr %s17, 4
          %s178 = smul.addr %s177, 8
          %s179 = scalar_lea.hbm %s1, %s178
          %s180 = sshll.u32 %s179, 4
          %s181 = int_to_ptr.hbm [resolvable:$true] %s180
          %s182 = sshll.u32 %s174, 4
          %s183 = int_to_ptr.vmem [resolvable:$true] %s182
          %188 = dma.hbm_to_vmem [thread:$0]  %s181, 512, %s183, %s171, 256, 256, 16
        $region32: #{tpu_custom_call.1} parent=27 // pred_fallthru
          _
      $region28: #{tpu_custom_call.1} parent=5 // pred_fallthru
        _
      %p189 = scmp.le.s32.totalorder 1, %s17
      %p190 = scmp.lt.s32.totalorder %s17, 3
      %p191 = pnand %p189, %p190
      %p192 = pneg %p191
      // Predicated region
      $region33: #{tpu_custom_call.1} parent=5 // pred_check
        _
      $region34: #{tpu_custom_call.1} parent=5 // pred_check_branch
        %194 = sbr.rel (%p191) target = $region36
      $region35: #{tpu_custom_call.1} parent=5 // pred_region
        %s195 = ssub.s32 %s17, 1
        // Predicated region
        $region37: #{tpu_custom_call.1} parent=35 // pred_check
          %p196 = pneg %p38
        $region38: #{tpu_custom_call.1} parent=35 // pred_check_branch
          %198 = sbr.rel (%p196) target = $region40
        $region39: #{tpu_custom_call.1} parent=35 // pred_region
          %200 = dma.done [#allocation7], 16
        $region40: #{tpu_custom_call.1} parent=35 // pred_fallthru
          _
        %s201 = sand.u32 %s51, 1
        %s202 = scalar_lea.sflag [#allocation5], %s201
        %s203 = sand.u32 %s51, 1
        %s204 = smul.addr %s203, 32
        %s205 = scalar_lea.vmem [#allocation8], %s204
        // Predicated region
        $region41: #{tpu_custom_call.1} parent=35 // pred_check
          %p206 = pneg %p64
        $region42: #{tpu_custom_call.1} parent=35 // pred_check_branch
          %208 = sbr.rel (%p206) target = $region44
        $region43: #{tpu_custom_call.1} parent=35 // pred_region
          %210 = dma.done %s202, 512
        $region44: #{tpu_custom_call.1} parent=35 // pred_fallthru
          _
        %211 = sfence
        %p212 = pneg %p38
        %p213 = pneg %p35
        %s214 = sand.u32 %s51, 1
        %s215 = scalar_lea.sflag [#allocation5], %s214
        %s216 = sand.u32 %s51, 1
        %s217 = smul.addr %s216, 32
        %s218 = scalar_lea.vmem [#allocation8], %s217
        %p219 = pneg %p64
        %p220 = pneg %p61
        %p221 = pneg %p85
        %p222 = pneg %p82
        %p223 = pneg %p106
        %p224 = pneg %p103
        %p225 = pneg %p132
        %p226 = pneg %p129
        %s227 = sand.u32 %s119, 1
        %s228 = scalar_lea.sflag [#allocation6], %s227
        %s229 = sand.u32 %s119, 1
        %s230 = smul.addr %s229, 32
        %s231 = scalar_lea.vmem [#allocation9], %s230
        %v232 = vld [vmem:[%s205] sm:$0xff]
        %v233 = vld [vmem:[%s205 + $0x8] sm:$0xff]
        %v234 = vld [vmem:[%s205 + $0x10] sm:$0xff]
        %v235 = vld [vmem:[%s205 + $0x18] sm:$0xff]
        %v236 = vadd.f32 %v232, %v233
        %237 = vadd.xlane.f32.xlu0 %v236
        %v238 = vpop.xlane.xlu0 %237
        %v239 = vadd.f32 %v234, %v235
        %240 = vadd.xlane.f32.xlu0 %v239
        %v241 = vpop.xlane.xlu0 %240
        %v242 = vrcp.pop 256.0
        %v243 = vmul.f32 256.0, %v242
        %v244 = vsub.f32 1.0, %v243
        %v245 = vmul.f32 %v242, %v244
        %v246 = vadd.f32 %v242, %v245
        %vm247 = vweird.f32 %v242
        %v248 = vsel %vm247, %v242, %v246
        %v249 = vmul.f32 %v238, %v248
        %v250 = vmul.f32 %v241, %v248
        %v251 = vmax.f32 %v232, %v233
        %252 = vmax.xlane.f32.xlu0 %v251
        %v253 = vpop.xlane.xlu0 %252
        %v254 = vmax.f32 %v234, %v235
        %255 = vmax.xlane.f32.xlu0 %v254
        %v256 = vpop.xlane.xlu0 %255
        %v257 = vld [vmem:[%s2] sm:$0xff]
        %v258 = vld [vmem:[%s2 + $0x8] sm:$0xff]
        %v259 = vld [vmem:[%s3] sm:$0x3]
        %v262 = vlaneseq
        %v263 = vand.u32 %v262, 127
        %v264 = vperm.slane %v249, %v263
        %v265 = vadd.s32 %v263, 4294967288
        %v266 = vperm.slane %v250, %v265
        %vm267 = vcmask 130112
        %v268 = vsel %vm267, %v266, %v264
        %vm269 = vcmask 130048
        %v270 = vsel %vm269, %v268, 0
        %272 = vmatpush.msra.mxu0 0.0
        %273 = vmatpush.msra.mxu0 0.0
        %274 = vmatpush.msra.mxu0 0.0
        %275 = vmatpush.msra.mxu0 0.0
        %276 = vmatpush.msra.mxu0 0.0
        %277 = vmatpush.msra.mxu0 0.0
        %278 = vmatpush.msra.mxu0 0.0
        %279 = vmatpush.msra.mxu0 0.0
        %280 = vmatpush.msra.mxu0 0.0
        %281 = vmatpush.msra.mxu0 0.0
        %282 = vmatpush.msra.mxu0 0.0
        %283 = vmatpush.msra.mxu0 0.0
        %284 = vmatpush.msra.mxu0 0.0
        %285 = vmatpush.msra.mxu0 0.0
        %286 = vmatpush.msra.mxu0 %v258
        %287 = vmatpush.msra.mxu0 %v257
        %288 = vmatmul.f32.gmra.mxu0 %v270
        %v289 = vpop.f32.mrf.mxu0
        %v290 = vadd.f32 0.0, %v289
        %291 = vdwg.mxu0
        %v292 = vmax.f32 %v290, 0.0
        %v295 = vperm.slane %v253, %v263
        %v296 = vperm.slane %v256, %v265
        %v297 = vsel %vm267, %v296, %v295
        %v298 = vsel %vm269, %v297, 0
        %300 = vmatpush.msra.mxu0 0.0
        %301 = vmatpush.msra.mxu0 0.0
        %302 = vmatpush.msra.mxu0 0.0
        %303 = vmatpush.msra.mxu0 0.0
        %304 = vmatpush.msra.mxu0 0.0
        %305 = vmatpush.msra.mxu0 0.0
        %306 = vmatpush.msra.mxu0 0.0
        %307 = vmatpush.msra.mxu0 0.0
        %308 = vmatpush.msra.mxu0 0.0
        %309 = vmatpush.msra.mxu0 0.0
        %310 = vmatpush.msra.mxu0 0.0
        %311 = vmatpush.msra.mxu0 0.0
        %312 = vmatpush.msra.mxu0 0.0
        %313 = vmatpush.msra.mxu0 0.0
        %314 = vmatpush.msra.mxu0 %v258
        %315 = vmatpush.msra.mxu0 %v257
        %316 = vmatmul.f32.gmra.mxu0 %v298
        %v317 = vpop.f32.mrf.mxu0
        %v318 = vadd.f32 0.0, %v317
        %319 = vdwg.mxu0
        %v320 = vmax.f32 %v318, 0.0
        %vm321 = vcmask 15360
        %v323 = vsel %vm321, %v320, 0
        %vm325 = vcmask 1041408
        %v327 = vsel %vm325, %v259, 0
        %329 = vmatpush.msra.mxu0 0.0
        %330 = vmatpush.msra.mxu0 0.0
        %331 = vmatpush.msra.mxu0 0.0
        %332 = vmatpush.msra.mxu0 0.0
        %333 = vmatpush.msra.mxu0 0.0
        %334 = vmatpush.msra.mxu0 0.0
        %335 = vmatpush.msra.mxu0 0.0
        %336 = vmatpush.msra.mxu0 0.0
        %337 = vmatpush.msra.mxu0 0.0
        %338 = vmatpush.msra.mxu0 0.0
        %339 = vmatpush.msra.mxu0 0.0
        %340 = vmatpush.msra.mxu0 0.0
        %341 = vmatpush.msra.mxu0 0.0
        %342 = vmatpush.msra.mxu0 0.0
        %343 = vmatpush.msra.mxu0 0.0
        %344 = vmatpush.msra.mxu0 %v327
        %345 = vmatmul.f32.gmra.mxu0 %v323
        %v346 = vpop.f32.mrf.mxu0
        %v347 = vadd.f32 0.0, %v346
        %348 = vdwg.mxu0
        %v350 = vsel %vm321, %v292, 0
        %352 = vmatpush.msra.mxu0 0.0
        %353 = vmatpush.msra.mxu0 0.0
        %354 = vmatpush.msra.mxu0 0.0
        %355 = vmatpush.msra.mxu0 0.0
        %356 = vmatpush.msra.mxu0 0.0
        %357 = vmatpush.msra.mxu0 0.0
        %358 = vmatpush.msra.mxu0 0.0
        %359 = vmatpush.msra.mxu0 0.0
        %360 = vmatpush.msra.mxu0 0.0
        %361 = vmatpush.msra.mxu0 0.0
        %362 = vmatpush.msra.mxu0 0.0
        %363 = vmatpush.msra.mxu0 0.0
        %364 = vmatpush.msra.mxu0 0.0
        %365 = vmatpush.msra.mxu0 0.0
        %366 = vmatpush.msra.mxu0 0.0
        %367 = vmatpush.msra.mxu0 %v327
        %368 = vmatmul.f32.gmra.mxu0 %v350
        %v369 = vpop.f32.mrf.mxu0
        %v370 = vadd.f32 %v347, %v369
        %371 = vdwg.mxu0
        %v372 = vxor.u32 %v370, 2147483648
        %v373 = vmul.f32 %v372, 1.442695
        %v374 = vpow.pop %v373
        %v375 = vadd.f32 %v374, 1.0
        %v376 = vrcp.pop %v375
        %v377 = vmul.f32 %v375, %v376
        %v378 = vsub.f32 1.0, %v377
        %v379 = vmul.f32 %v376, %v378
        %v380 = vadd.f32 %v376, %v379
        %vm381 = vweird.f32 %v375
        %vm382 = vweird.f32 %v376
        %vm383 = vmor %vm381, %vm382
        %v384 = vsel %vm383, %v376, %v380
        %v385 = vand.u32 2147483647, %v375
        %vm386 = vcmp.eq.f32.partialorder %v385, 8.507059e+37
        %v387 = vand.u32 %v375, 2147483648
        %v388 = vor.u32 1.1754944e-38, %v387
        %v389 = vsel %vm386, %v388, %v384
        %v390 = vmul.f32 1.0, %v389
        %v391 = vperm.slane %v390, 0
        %v392 = vlaneseq
        %v393 = vshrl.u32 %v392, 7
        %395 = vset.pattern.permute.xlu0 %v393
        %396 = vperm.xlu0 %395, %v391
        %v397 = vpop.permute.xlu0 %396
        %v398 = vlaneseq
        %v399 = vshrl.u32 %v398, 7
        %v400 = vadd.s32 %v399, 8
        %401 = vset.pattern.permute.xlu0 %v400
        %402 = vperm.xlu0 %401, %v391
        %v403 = vpop.permute.xlu0 %402
        %v404 = vmul.f32 %v232, %v397
        %v405 = vmul.f32 %v233, %v397
        %v406 = vmul.f32 %v234, %v403
        %v407 = vmul.f32 %v235, %v403
        %v408 = vadd.f32 %v404, %v406
        %v409 = vrot.slane %v408, 4
        %v410 = vadd.f32 %v408, %v409
        %v411 = vrot.slane %v410, 2
        %v412 = vadd.f32 %v410, %v411
        %v413 = vrot.slane %v412, 1
        %v414 = vadd.f32 %v412, %v413
        %v415 = vadd.f32 %v405, %v407
        %v416 = vrot.slane %v415, 4
        %v417 = vadd.f32 %v415, %v416
        %v418 = vrot.slane %v417, 2
        %v419 = vadd.f32 %v417, %v418
        %v420 = vrot.slane %v419, 1
        %v421 = vadd.f32 %v419, %v420
        %v422 = vrcp.pop 16.0
        %v423 = vmul.f32 16.0, %v422
        %v424 = vsub.f32 1.0, %v423
        %v425 = vmul.f32 %v422, %v424
        %v426 = vadd.f32 %v422, %v425
        %vm427 = vweird.f32 %v422
        %v428 = vsel %vm427, %v422, %v426
        %v429 = vmul.f32 %v414, %v428
        %v430 = vmul.f32 %v421, %v428
        %v431 = vmax.f32 %v404, %v406
        %v432 = vrot.slane %v431, 4
        %v433 = vmax.f32 %v431, %v432
        %v434 = vrot.slane %v433, 2
        %v435 = vmax.f32 %v433, %v434
        %v436 = vrot.slane %v435, 1
        %v437 = vmax.f32 %v435, %v436
        %v438 = vmax.f32 %v405, %v407
        %v439 = vrot.slane %v438, 4
        %v440 = vmax.f32 %v438, %v439
        %v441 = vrot.slane %v440, 2
        %v442 = vmax.f32 %v440, %v441
        %v443 = vrot.slane %v442, 1
        %v444 = vmax.f32 %v442, %v443
        %v445 = vlaneseq
        %vm446 = vcmp.ge.s32.totalorder %v445, 0
        %vm447 = vcmp.lt.s32.totalorder %v445, 384
        %vm448 = vmand %vm446, %vm447
        %449 = vst.msk [vmem:[#allocation2] sm:$0x7] %vm448, 0.0
        %450 = vst.msk [vmem:[#allocation3] sm:$0x7] %vm448, 0.0
        %v453 = vrot.slane %v430, 7
        %vm454 = vcmask 1040384
        %v455 = vsel %vm454, %v429, %v453
        %456 = vrot.lane.b32.xlu0 %v455, 56
        %v457 = vpop.permute.xlu0 %456
        %v458 = vrot.slane %v457, 7
        %vm459 = vcmask 457728
        %v460 = vsel %vm459, %v458, %v457
        %vm462 = vcmp.ge.s32.totalorder %v445, 56
        %vm463 = vcmp.lt.s32.totalorder %v445, 312
        %vm464 = vmand %vm462, %vm463
        %465 = vst.msk [vmem:[#allocation2] sm:$0x7] %vm464, %v460
        %v468 = vrot.slane %v444, 7
        %v469 = vsel %vm454, %v437, %v468
        %470 = vrot.lane.b32.xlu0 %v469, 56
        %v471 = vpop.permute.xlu0 %470
        %v472 = vrot.slane %v471, 7
        %v473 = vsel %vm459, %v472, %v471
        %475 = vst.msk [vmem:[#allocation3] sm:$0x7] %vm464, %v473
        %v476 = vadd.s32 %v263, 128
        %vm477 = vcmp.lt.s32.totalorder %v263, 0
        %v478 = vsub.s32 0, %v263
        %v479 = vsel %vm477, %v478, %v263
        %v480 = vshrl.u32 %v479, 4
        %v481 = vand.u32 %v479, 15
        %v482 = vsub.s32 0, %v481
        %v483 = vsel %vm477, %v482, %v481
        %vm484 = vcmp.lt.s32.totalorder %v476, 0
        %v485 = vsub.s32 0, %v476
        %v486 = vsel %vm484, %v485, %v476
        %v487 = vshrl.u32 %v486, 4
        %v488 = vand.u32 %v486, 15
        %v489 = vsub.s32 0, %v488
        %v490 = vsel %vm484, %v489, %v488
        %vm491 = vcmp.ne.s32.totalorder %v483, 0
        %vm492 = vcmp.ne.s32.totalorder %v490, 0
        %vm493 = vcmp.lt.s32.totalorder %v483, 0
        %vm494 = vcmp.lt.s32.totalorder %v490, 0
        %vm495 = vmand %vm493, %vm491
        %vm496 = vmand %vm494, %vm492
        %v497 = vadd.s32 %v483, 16
        %v498 = vadd.s32 %v490, 16
        %v499 = vsel %vm495, %v497, %v483
        %v500 = vsel %vm496, %v498, %v490
        %s501 = sld [smem:[#allocation4]]
        %s502 = sld [smem:[#allocation4 + $0x31]]
        %v503 = vld [vmem:[#allocation2] sm:$0x7]
        %v504 = vstv %s501
        %v505 = vmul.f32 %v503, %v504
        %v506 = vld [vmem:[#allocation3] sm:$0x7]
        %v507 = vstv %s502
        %v508 = vmul.f32 %v506, %v507
        %v509 = vadd.f32 %v505, %v508
        %v510 = vadd.f32 %v509, 0.0
        %s511 = sld [smem:[#allocation4 + $0x7]]
        %s512 = sld [smem:[#allocation4 + $0x38]]
        %v513 = vstv %s511
        %v514 = vmul.f32 %v503, %v513
        %v515 = vstv %s512
        %v516 = vmul.f32 %v506, %v515
        %v517 = vadd.f32 %v514, %v516
        %v518 = vadd.f32 %v517, 0.0
        %s519 = sld [smem:[#allocation4 + $0xe]]
        %s520 = sld [smem:[#allocation4 + $0x3f]]
        %v521 = vstv %s519
        %v522 = vmul.f32 %v503, %v521
        %v523 = vstv %s520
        %v524 = vmul.f32 %v506, %v523
        %v525 = vadd.f32 %v522, %v524
        %527 = vrot.lane.b32.xlu0 %v525, 96
        %v528 = vpop.permute.xlu0 %527
        %v529 = vrot.slane %v528, 1
        %vm530 = vcmask 785408
        %v531 = vsel %vm530, %v528, %v529
        %v533 = vadd.f32 %v510, %v531
        %s534 = sld [smem:[#allocation4 + $0x15]]
        %s535 = sld [smem:[#allocation4 + $0x46]]
        %v536 = vstv %s534
        %v537 = vmul.f32 %v503, %v536
        %v538 = vstv %s535
        %v539 = vmul.f32 %v506, %v538
        %v540 = vadd.f32 %v537, %v539
        %542 = vrot.lane.b32.xlu0 %v540, 96
        %v543 = vpop.permute.xlu0 %542
        %v544 = vrot.slane %v543, 1
        %v545 = vsel %vm530, %v543, %v544
        %v547 = vadd.f32 %v518, %v545
        %s548 = sld [smem:[#allocation4 + $0x1c]]
        %s549 = sld [smem:[#allocation4 + $0x4d]]
        %v550 = vstv %s548
        %v551 = vmul.f32 %v503, %v550
        %v552 = vstv %s549
        %v553 = vmul.f32 %v506, %v552
        %v554 = vadd.f32 %v551, %v553
        %556 = vrot.lane.b32.xlu0 %v554, 64
        %v557 = vpop.permute.xlu0 %556
        %v558 = vrot.slane %v557, 1
        %vm559 = vcmask 523264
        %v560 = vsel %vm559, %v557, %v558
        %v562 = vadd.f32 %v533, %v560
        %s563 = sld [smem:[#allocation4 + $0x23]]
        %s564 = sld [smem:[#allocation4 + $0x54]]
        %v565 = vstv %s563
        %v566 = vmul.f32 %v503, %v565
        %v567 = vstv %s564
        %v568 = vmul.f32 %v506, %v567
        %v569 = vadd.f32 %v566, %v568
        %571 = vrot.lane.b32.xlu0 %v569, 64
        %v572 = vpop.permute.xlu0 %571
        %v573 = vrot.slane %v572, 1
        %v574 = vsel %vm559, %v572, %v573
        %v576 = vadd.f32 %v547, %v574
        %s577 = sld [smem:[#allocation4 + $0x2a]]
        %s578 = sld [smem:[#allocation4 + $0x5b]]
        %v579 = vstv %s577
        %v580 = vmul.f32 %v503, %v579
        %v581 = vstv %s578
        %v582 = vmul.f32 %v506, %v581
        %v583 = vadd.f32 %v580, %v582
        %585 = vrot.lane.b32.xlu0 %v583, 32
        %v586 = vpop.permute.xlu0 %585
        %v587 = vrot.slane %v586, 1
        %vm588 = vcmask 261120
        %v589 = vsel %vm588, %v586, %v587
        %v591 = vadd.f32 %v562, %v589
        %vm592 = vcmp.ge.s32.totalorder %v499, 3
        %vm593 = vcmp.ge.s32.totalorder %v500, 3
        %vm594 = vcmp.le.s32.totalorder %v499, 15
        %vm595 = vcmp.le.s32.totalorder %v500, 15
        %vm596 = vmand %vm592, %vm594
        %vm597 = vmand %vm593, %vm595
        %599 = vrot.lane.b32.xlu0 %v576, 112
        %v600 = vpop.permute.xlu0 %599
        %v601 = vrot.slane %v600, 1
        %vm602 = vcmask 916480
        %v603 = vsel %vm602, %v600, %v601
        %v605 = vadd.f32 %v591, %v603
        %v607 = vperm.slane %v605, 0
        %v608 = vperm.slane %v605, 1
        %v609 = vperm.slane %v605, 2
        %610 = vrot.lane.b32.xlu0 %v607, 123
        %v611 = vpop.permute.xlu0 %610
        %612 = vrot.lane.b32.xlu0 %v608, 123
        %v613 = vpop.permute.xlu0 %612
        %614 = vrot.lane.b32.xlu0 %v609, 123
        %v615 = vpop.permute.xlu0 %614
        %vm616 = vcmask 1006592
        %v617 = vsel %vm616, %v611, %v613
        %v618 = vsel %vm616, %v613, %v615
        %v621 = vsel %vm596, %v617, 0.0
        %v622 = vsel %vm597, %v618, 0.0
        %v623 = vadd.f32 %v621, 0.0
        %v624 = vadd.f32 %v622, 0.0
        %s625 = sld [smem:[#allocation4 + $0x1]]
        %s626 = sld [smem:[#allocation4 + $0x32]]
        %v627 = vstv %s625
        %v628 = vmul.f32 %v503, %v627
        %v629 = vstv %s626
        %v630 = vmul.f32 %v506, %v629
        %v631 = vadd.f32 %v628, %v630
        %v632 = vadd.f32 %v631, 0.0
        %s633 = sld [smem:[#allocation4 + $0x8]]
        %s634 = sld [smem:[#allocation4 + $0x39]]
        %v635 = vstv %s633
        %v636 = vmul.f32 %v503, %v635
        %v637 = vstv %s634
        %v638 = vmul.f32 %v506, %v637
        %v639 = vadd.f32 %v636, %v638
        %v640 = vadd.f32 %v639, 0.0
        %s641 = sld [smem:[#allocation4 + $0xf]]
        %s642 = sld [smem:[#allocation4 + $0x40]]
        %v643 = vstv %s641
        %v644 = vmul.f32 %v503, %v643
        %v645 = vstv %s642
        %v646 = vmul.f32 %v506, %v645
        %v647 = vadd.f32 %v644, %v646
        %649 = vrot.lane.b32.xlu0 %v647, 96
        %v650 = vpop.permute.xlu0 %649
        %v651 = vrot.slane %v650, 1
        %v652 = vsel %vm530, %v650, %v651
        %v654 = vadd.f32 %v632, %v652
        %s655 = sld [smem:[#allocation4 + $0x16]]
        %s656 = sld [smem:[#allocation4 + $0x47]]
        %v657 = vstv %s655
        %v658 = vmul.f32 %v503, %v657
        %v659 = vstv %s656
        %v660 = vmul.f32 %v506, %v659
        %v661 = vadd.f32 %v658, %v660
        %663 = vrot.lane.b32.xlu0 %v661, 96
        %v664 = vpop.permute.xlu0 %663
        %v665 = vrot.slane %v664, 1
        %v666 = vsel %vm530, %v664, %v665
        %v668 = vadd.f32 %v640, %v666
        %s669 = sld [smem:[#allocation4 + $0x1d]]
        %s670 = sld [smem:[#allocation4 + $0x4e]]
        %v671 = vstv %s669
        %v672 = vmul.f32 %v503, %v671
        %v673 = vstv %s670
        %v674 = vmul.f32 %v506, %v673
        %v675 = vadd.f32 %v672, %v674
        %677 = vrot.lane.b32.xlu0 %v675, 64
        %v678 = vpop.permute.xlu0 %677
        %v679 = vrot.slane %v678, 1
        %v680 = vsel %vm559, %v678, %v679
        %v682 = vadd.f32 %v654, %v680
        %s683 = sld [smem:[#allocation4 + $0x24]]
        %s684 = sld [smem:[#allocation4 + $0x55]]
        %v685 = vstv %s683
        %v686 = vmul.f32 %v503, %v685
        %v687 = vstv %s684
        %v688 = vmul.f32 %v506, %v687
        %v689 = vadd.f32 %v686, %v688
        %691 = vrot.lane.b32.xlu0 %v689, 64
        %v692 = vpop.permute.xlu0 %691
        %v693 = vrot.slane %v692, 1
        %v694 = vsel %vm559, %v692, %v693
        %v696 = vadd.f32 %v668, %v694
        %s697 = sld [smem:[#allocation4 + $0x2b]]
        %s698 = sld [smem:[#allocation4 + $0x5c]]
        %v699 = vstv %s697
        %v700 = vmul.f32 %v503, %v699
        %v701 = vstv %s698
        %v702 = vmul.f32 %v506, %v701
        %v703 = vadd.f32 %v700, %v702
        %705 = vrot.lane.b32.xlu0 %v703, 32
        %v706 = vpop.permute.xlu0 %705
        %v707 = vrot.slane %v706, 1
        %v708 = vsel %vm588, %v706, %v707
        %v710 = vadd.f32 %v682, %v708
        %vm711 = vcmp.ge.s32.totalorder %v499, 2
        %vm712 = vcmp.ge.s32.totalorder %v500, 2
        %vm713 = vmand %vm711, %vm594
        %vm714 = vmand %vm712, %vm595
        %716 = vrot.lane.b32.xlu0 %v696, 112
        %v717 = vpop.permute.xlu0 %716
        %v718 = vrot.slane %v717, 1
        %v719 = vsel %vm602, %v717, %v718
        %v721 = vadd.f32 %v710, %v719
        %v723 = vperm.slane %v721, 0
        %v724 = vperm.slane %v721, 1
        %v725 = vperm.slane %v721, 2
        %726 = vrot.lane.b32.xlu0 %v723, 122
        %v727 = vpop.permute.xlu0 %726
        %728 = vrot.lane.b32.xlu0 %v724, 122
        %v729 = vpop.permute.xlu0 %728
        %730 = vrot.lane.b32.xlu0 %v725, 122
        %v731 = vpop.permute.xlu0 %730
        %vm732 = vcmask 998400
        %v733 = vsel %vm732, %v727, %v729
        %v734 = vsel %vm732, %v729, %v731
        %v737 = vsel %vm713, %v733, 0.0
        %v738 = vsel %vm714, %v734, 0.0
        %v739 = vadd.f32 %v737, 0.0
        %v740 = vadd.f32 %v738, 0.0
        %s741 = sld [smem:[#allocation4 + $0x2]]
        %s742 = sld [smem:[#allocation4 + $0x33]]
        %v743 = vstv %s741
        %v744 = vmul.f32 %v503, %v743
        %v745 = vstv %s742
        %v746 = vmul.f32 %v506, %v745
        %v747 = vadd.f32 %v744, %v746
        %v748 = vadd.f32 %v747, 0.0
        %s749 = sld [smem:[#allocation4 + $0x9]]
        %s750 = sld [smem:[#allocation4 + $0x3a]]
        %v751 = vstv %s749
        %v752 = vmul.f32 %v503, %v751
        %v753 = vstv %s750
        %v754 = vmul.f32 %v506, %v753
        %v755 = vadd.f32 %v752, %v754
        %v756 = vadd.f32 %v755, 0.0
        %s757 = sld [smem:[#allocation4 + $0x10]]
        %s758 = sld [smem:[#allocation4 + $0x41]]
        %v759 = vstv %s757
        %v760 = vmul.f32 %v503, %v759
        %v761 = vstv %s758
        %v762 = vmul.f32 %v506, %v761
        %v763 = vadd.f32 %v760, %v762
        %765 = vrot.lane.b32.xlu0 %v763, 96
        %v766 = vpop.permute.xlu0 %765
        %v767 = vrot.slane %v766, 1
        %v768 = vsel %vm530, %v766, %v767
        %v770 = vadd.f32 %v748, %v768
        %s771 = sld [smem:[#allocation4 + $0x17]]
        %s772 = sld [smem:[#allocation4 + $0x48]]
        %v773 = vstv %s771
        %v774 = vmul.f32 %v503, %v773
        %v775 = vstv %s772
        %v776 = vmul.f32 %v506, %v775
        %v777 = vadd.f32 %v774, %v776
        %779 = vrot.lane.b32.xlu0 %v777, 96
        %v780 = vpop.permute.xlu0 %779
        %v781 = vrot.slane %v780, 1
        %v782 = vsel %vm530, %v780, %v781
        %v784 = vadd.f32 %v756, %v782
        %s785 = sld [smem:[#allocation4 + $0x1e]]
        %s786 = sld [smem:[#allocation4 + $0x4f]]
        %v787 = vstv %s785
        %v788 = vmul.f32 %v503, %v787
        %v789 = vstv %s786
        %v790 = vmul.f32 %v506, %v789
        %v791 = vadd.f32 %v788, %v790
        %793 = vrot.lane.b32.xlu0 %v791, 64
        %v794 = vpop.permute.xlu0 %793
        %v795 = vrot.slane %v794, 1
        %v796 = vsel %vm559, %v794, %v795
        %v798 = vadd.f32 %v770, %v796
        %s799 = sld [smem:[#allocation4 + $0x25]]
        %s800 = sld [smem:[#allocation4 + $0x56]]
        %v801 = vstv %s799
        %v802 = vmul.f32 %v503, %v801
        %v803 = vstv %s800
        %v804 = vmul.f32 %v506, %v803
        %v805 = vadd.f32 %v802, %v804
        %807 = vrot.lane.b32.xlu0 %v805, 64
        %v808 = vpop.permute.xlu0 %807
        %v809 = vrot.slane %v808, 1
        %v810 = vsel %vm559, %v808, %v809
        %v812 = vadd.f32 %v784, %v810
        %s813 = sld [smem:[#allocation4 + $0x2c]]
        %s814 = sld [smem:[#allocation4 + $0x5d]]
        %v815 = vstv %s813
        %v816 = vmul.f32 %v503, %v815
        %v817 = vstv %s814
        %v818 = vmul.f32 %v506, %v817
        %v819 = vadd.f32 %v816, %v818
        %821 = vrot.lane.b32.xlu0 %v819, 32
        %v822 = vpop.permute.xlu0 %821
        %v823 = vrot.slane %v822, 1
        %v824 = vsel %vm588, %v822, %v823
        %v826 = vadd.f32 %v798, %v824
        %vm827 = vcmp.ge.s32.totalorder %v499, 1
        %vm828 = vcmp.ge.s32.totalorder %v500, 1
        %vm829 = vmand %vm827, %vm594
        %vm830 = vmand %vm828, %vm595
        %832 = vrot.lane.b32.xlu0 %v812, 112
        %v833 = vpop.permute.xlu0 %832
        %v834 = vrot.slane %v833, 1
        %v835 = vsel %vm602, %v833, %v834
        %v837 = vadd.f32 %v826, %v835
        %v839 = vperm.slane %v837, 0
        %v840 = vperm.slane %v837, 1
        %v841 = vperm.slane %v837, 2
        %842 = vrot.lane.b32.xlu0 %v839, 121
        %v843 = vpop.permute.xlu0 %842
        %844 = vrot.lane.b32.xlu0 %v840, 121
        %v845 = vpop.permute.xlu0 %844
        %846 = vrot.lane.b32.xlu0 %v841, 121
        %v847 = vpop.permute.xlu0 %846
        %vm848 = vcmask 990208
        %v849 = vsel %vm848, %v843, %v845
        %v850 = vsel %vm848, %v845, %v847
        %v853 = vsel %vm829, %v849, 0.0
        %v854 = vsel %vm830, %v850, 0.0
        %v855 = vadd.f32 %v623, %v853
        %v856 = vadd.f32 %v624, %v854
        %s857 = sld [smem:[#allocation4 + $0x3]]
        %s858 = sld [smem:[#allocation4 + $0x34]]
        %v859 = vstv %s857
        %v860 = vmul.f32 %v503, %v859
        %v861 = vstv %s858
        %v862 = vmul.f32 %v506, %v861
        %v863 = vadd.f32 %v860, %v862
        %v864 = vadd.f32 %v863, 0.0
        %s865 = sld [smem:[#allocation4 + $0xa]]
        %s866 = sld [smem:[#allocation4 + $0x3b]]
        %v867 = vstv %s865
        %v868 = vmul.f32 %v503, %v867
        %v869 = vstv %s866
        %v870 = vmul.f32 %v506, %v869
        %v871 = vadd.f32 %v868, %v870
        %v872 = vadd.f32 %v871, 0.0
        %s873 = sld [smem:[#allocation4 + $0x11]]
        %s874 = sld [smem:[#allocation4 + $0x42]]
        %v875 = vstv %s873
        %v876 = vmul.f32 %v503, %v875
        %v877 = vstv %s874
        %v878 = vmul.f32 %v506, %v877
        %v879 = vadd.f32 %v876, %v878
        %881 = vrot.lane.b32.xlu0 %v879, 96
        %v882 = vpop.permute.xlu0 %881
        %v883 = vrot.slane %v882, 1
        %v884 = vsel %vm530, %v882, %v883
        %v886 = vadd.f32 %v864, %v884
        %s887 = sld [smem:[#allocation4 + $0x18]]
        %s888 = sld [smem:[#allocation4 + $0x49]]
        %v889 = vstv %s887
        %v890 = vmul.f32 %v503, %v889
        %v891 = vstv %s888
        %v892 = vmul.f32 %v506, %v891
        %v893 = vadd.f32 %v890, %v892
        %895 = vrot.lane.b32.xlu0 %v893, 96
        %v896 = vpop.permute.xlu0 %895
        %v897 = vrot.slane %v896, 1
        %v898 = vsel %vm530, %v896, %v897
        %v900 = vadd.f32 %v872, %v898
        %s901 = sld [smem:[#allocation4 + $0x1f]]
        %s902 = sld [smem:[#allocation4 + $0x50]]
        %v903 = vstv %s901
        %v904 = vmul.f32 %v503, %v903
        %v905 = vstv %s902
        %v906 = vmul.f32 %v506, %v905
        %v907 = vadd.f32 %v904, %v906
        %909 = vrot.lane.b32.xlu0 %v907, 64
        %v910 = vpop.permute.xlu0 %909
        %v911 = vrot.slane %v910, 1
        %v912 = vsel %vm559, %v910, %v911
        %v914 = vadd.f32 %v886, %v912
        %s915 = sld [smem:[#allocation4 + $0x26]]
        %s916 = sld [smem:[#allocation4 + $0x57]]
        %v917 = vstv %s915
        %v918 = vmul.f32 %v503, %v917
        %v919 = vstv %s916
        %v920 = vmul.f32 %v506, %v919
        %v921 = vadd.f32 %v918, %v920
        %923 = vrot.lane.b32.xlu0 %v921, 64
        %v924 = vpop.permute.xlu0 %923
        %v925 = vrot.slane %v924, 1
        %v926 = vsel %vm559, %v924, %v925
        %v928 = vadd.f32 %v900, %v926
        %s929 = sld [smem:[#allocation4 + $0x2d]]
        %s930 = sld [smem:[#allocation4 + $0x5e]]
        %v931 = vstv %s929
        %v932 = vmul.f32 %v503, %v931
        %v933 = vstv %s930
        %v934 = vmul.f32 %v506, %v933
        %v935 = vadd.f32 %v932, %v934
        %937 = vrot.lane.b32.xlu0 %v935, 32
        %v938 = vpop.permute.xlu0 %937
        %v939 = vrot.slane %v938, 1
        %v940 = vsel %vm588, %v938, %v939
        %v942 = vadd.f32 %v914, %v940
        %vm943 = vcmp.ge.s32.totalorder %v499, 0
        %vm944 = vcmp.ge.s32.totalorder %v500, 0
        %vm945 = vmand %vm943, %vm594
        %vm946 = vmand %vm944, %vm595
        %948 = vrot.lane.b32.xlu0 %v928, 112
        %v949 = vpop.permute.xlu0 %948
        %v950 = vrot.slane %v949, 1
        %v951 = vsel %vm602, %v949, %v950
        %v953 = vadd.f32 %v942, %v951
        %v955 = vperm.slane %v953, 0
        %v956 = vperm.slane %v953, 1
        %v957 = vperm.slane %v953, 2
        %958 = vrot.lane.b32.xlu0 %v955, 120
        %v959 = vpop.permute.xlu0 %958
        %960 = vrot.lane.b32.xlu0 %v956, 120
        %v961 = vpop.permute.xlu0 %960
        %962 = vrot.lane.b32.xlu0 %v957, 120
        %v963 = vpop.permute.xlu0 %962
        %vm964 = vcmask 982016
        %v965 = vsel %vm964, %v959, %v961
        %v966 = vsel %vm964, %v961, %v963
        %v969 = vsel %vm945, %v965, 0.0
        %v970 = vsel %vm946, %v966, 0.0
        %v971 = vadd.f32 %v739, %v969
        %v972 = vadd.f32 %v740, %v970
        %s973 = sld [smem:[#allocation4 + $0x4]]
        %s974 = sld [smem:[#allocation4 + $0x35]]
        %v975 = vstv %s973
        %v976 = vmul.f32 %v503, %v975
        %v977 = vstv %s974
        %v978 = vmul.f32 %v506, %v977
        %v979 = vadd.f32 %v976, %v978
        %v980 = vadd.f32 %v979, 0.0
        %s981 = sld [smem:[#allocation4 + $0xb]]
        %s982 = sld [smem:[#allocation4 + $0x3c]]
        %v983 = vstv %s981
        %v984 = vmul.f32 %v503, %v983
        %v985 = vstv %s982
        %v986 = vmul.f32 %v506, %v985
        %v987 = vadd.f32 %v984, %v986
        %v988 = vadd.f32 %v987, 0.0
        %s989 = sld [smem:[#allocation4 + $0x12]]
        %s990 = sld [smem:[#allocation4 + $0x43]]
        %v991 = vstv %s989
        %v992 = vmul.f32 %v503, %v991
        %v993 = vstv %s990
        %v994 = vmul.f32 %v506, %v993
        %v995 = vadd.f32 %v992, %v994
        %997 = vrot.lane.b32.xlu0 %v995, 96
        %v998 = vpop.permute.xlu0 %997
        %v999 = vrot.slane %v998, 1
        %v1000 = vsel %vm530, %v998, %v999
        %v1002 = vadd.f32 %v980, %v1000
        %s1003 = sld [smem:[#allocation4 + $0x19]]
        %s1004 = sld [smem:[#allocation4 + $0x4a]]
        %v1005 = vstv %s1003
        %v1006 = vmul.f32 %v503, %v1005
        %v1007 = vstv %s1004
        %v1008 = vmul.f32 %v506, %v1007
        %v1009 = vadd.f32 %v1006, %v1008
        %1011 = vrot.lane.b32.xlu0 %v1009, 96
        %v1012 = vpop.permute.xlu0 %1011
        %v1013 = vrot.slane %v1012, 1
        %v1014 = vsel %vm530, %v1012, %v1013
        %v1016 = vadd.f32 %v988, %v1014
        %s1017 = sld [smem:[#allocation4 + $0x20]]
        %s1018 = sld [smem:[#allocation4 + $0x51]]
        %v1019 = vstv %s1017
        %v1020 = vmul.f32 %v503, %v1019
        %v1021 = vstv %s1018
        %v1022 = vmul.f32 %v506, %v1021
        %v1023 = vadd.f32 %v1020, %v1022
        %1025 = vrot.lane.b32.xlu0 %v1023, 64
        %v1026 = vpop.permute.xlu0 %1025
        %v1027 = vrot.slane %v1026, 1
        %v1028 = vsel %vm559, %v1026, %v1027
        %v1030 = vadd.f32 %v1002, %v1028
        %s1031 = sld [smem:[#allocation4 + $0x27]]
        %s1032 = sld [smem:[#allocation4 + $0x58]]
        %v1033 = vstv %s1031
        %v1034 = vmul.f32 %v503, %v1033
        %v1035 = vstv %s1032
        %v1036 = vmul.f32 %v506, %v1035
        %v1037 = vadd.f32 %v1034, %v1036
        %1039 = vrot.lane.b32.xlu0 %v1037, 64
        %v1040 = vpop.permute.xlu0 %1039
        %v1041 = vrot.slane %v1040, 1
        %v1042 = vsel %vm559, %v1040, %v1041
        %v1044 = vadd.f32 %v1016, %v1042
        %s1045 = sld [smem:[#allocation4 + $0x2e]]
        %s1046 = sld [smem:[#allocation4 + $0x5f]]
        %v1047 = vstv %s1045
        %v1048 = vmul.f32 %v503, %v1047
        %v1049 = vstv %s1046
        %v1050 = vmul.f32 %v506, %v1049
        %v1051 = vadd.f32 %v1048, %v1050
        %1053 = vrot.lane.b32.xlu0 %v1051, 32
        %v1054 = vpop.permute.xlu0 %1053
        %v1055 = vrot.slane %v1054, 1
        %v1056 = vsel %vm588, %v1054, %v1055
        %v1058 = vadd.f32 %v1030, %v1056
        %vm1059 = vcmp.le.s32.totalorder %v499, 14
        %vm1060 = vcmp.le.s32.totalorder %v500, 14
        %vm1061 = vmand %vm943, %vm1059
        %vm1062 = vmand %vm944, %vm1060
        %1064 = vrot.lane.b32.xlu0 %v1044, 112
        %v1065 = vpop.permute.xlu0 %1064
        %v1066 = vrot.slane %v1065, 1
        %v1067 = vsel %vm602, %v1065, %v1066
        %v1069 = vadd.f32 %v1058, %v1067
        %v1071 = vperm.slane %v1069, 0
        %v1072 = vperm.slane %v1069, 1
        %v1073 = vperm.slane %v1069, 2
        %1074 = vrot.lane.b32.xlu0 %v1071, 119
        %v1075 = vpop.permute.xlu0 %1074
        %1076 = vrot.lane.b32.xlu0 %v1072, 119
        %v1077 = vpop.permute.xlu0 %1076
        %1078 = vrot.lane.b32.xlu0 %v1073, 119
        %v1079 = vpop.permute.xlu0 %1078
        %vm1080 = vcmask 973824
        %v1081 = vsel %vm1080, %v1075, %v1077
        %v1082 = vsel %vm1080, %v1077, %v1079
        %v1085 = vsel %vm1061, %v1081, 0.0
        %v1086 = vsel %vm1062, %v1082, 0.0
        %v1087 = vadd.f32 %v855, %v1085
        %v1088 = vadd.f32 %v856, %v1086
        %s1089 = sld [smem:[#allocation4 + $0x5]]
        %s1090 = sld [smem:[#allocation4 + $0x36]]
        %v1091 = vstv %s1089
        %v1092 = vmul.f32 %v503, %v1091
        %v1093 = vstv %s1090
        %v1094 = vmul.f32 %v506, %v1093
        %v1095 = vadd.f32 %v1092, %v1094
        %v1096 = vadd.f32 %v1095, 0.0
        %s1097 = sld [smem:[#allocation4 + $0xc]]
        %s1098 = sld [smem:[#allocation4 + $0x3d]]
        %v1099 = vstv %s1097
        %v1100 = vmul.f32 %v503, %v1099
        %v1101 = vstv %s1098
        %v1102 = vmul.f32 %v506, %v1101
        %v1103 = vadd.f32 %v1100, %v1102
        %v1104 = vadd.f32 %v1103, 0.0
        %s1105 = sld [smem:[#allocation4 + $0x13]]
        %s1106 = sld [smem:[#allocation4 + $0x44]]
        %v1107 = vstv %s1105
        %v1108 = vmul.f32 %v503, %v1107
        %v1109 = vstv %s1106
        %v1110 = vmul.f32 %v506, %v1109
        %v1111 = vadd.f32 %v1108, %v1110
        %1113 = vrot.lane.b32.xlu0 %v1111, 96
        %v1114 = vpop.permute.xlu0 %1113
        %v1115 = vrot.slane %v1114, 1
        %v1116 = vsel %vm530, %v1114, %v1115
        %v1118 = vadd.f32 %v1096, %v1116
        %s1119 = sld [smem:[#allocation4 + $0x1a]]
        %s1120 = sld [smem:[#allocation4 + $0x4b]]
        %v1121 = vstv %s1119
        %v1122 = vmul.f32 %v503, %v1121
        %v1123 = vstv %s1120
        %v1124 = vmul.f32 %v506, %v1123
        %v1125 = vadd.f32 %v1122, %v1124
        %1127 = vrot.lane.b32.xlu0 %v1125, 96
        %v1128 = vpop.permute.xlu0 %1127
        %v1129 = vrot.slane %v1128, 1
        %v1130 = vsel %vm530, %v1128, %v1129
        %v1132 = vadd.f32 %v1104, %v1130
        %s1133 = sld [smem:[#allocation4 + $0x21]]
        %s1134 = sld [smem:[#allocation4 + $0x52]]
        %v1135 = vstv %s1133
        %v1136 = vmul.f32 %v503, %v1135
        %v1137 = vstv %s1134
        %v1138 = vmul.f32 %v506, %v1137
        %v1139 = vadd.f32 %v1136, %v1138
        %1141 = vrot.lane.b32.xlu0 %v1139, 64
        %v1142 = vpop.permute.xlu0 %1141
        %v1143 = vrot.slane %v1142, 1
        %v1144 = vsel %vm559, %v1142, %v1143
        %v1146 = vadd.f32 %v1118, %v1144
        %s1147 = sld [smem:[#allocation4 + $0x28]]
        %s1148 = sld [smem:[#allocation4 + $0x59]]
        %v1149 = vstv %s1147
        %v1150 = vmul.f32 %v503, %v1149
        %v1151 = vstv %s1148
        %v1152 = vmul.f32 %v506, %v1151
        %v1153 = vadd.f32 %v1150, %v1152
        %1155 = vrot.lane.b32.xlu0 %v1153, 64
        %v1156 = vpop.permute.xlu0 %1155
        %v1157 = vrot.slane %v1156, 1
        %v1158 = vsel %vm559, %v1156, %v1157
        %v1160 = vadd.f32 %v1132, %v1158
        %s1161 = sld [smem:[#allocation4 + $0x2f]]
        %s1162 = sld [smem:[#allocation4 + $0x60]]
        %v1163 = vstv %s1161
        %v1164 = vmul.f32 %v503, %v1163
        %v1165 = vstv %s1162
        %v1166 = vmul.f32 %v506, %v1165
        %v1167 = vadd.f32 %v1164, %v1166
        %1169 = vrot.lane.b32.xlu0 %v1167, 32
        %v1170 = vpop.permute.xlu0 %1169
        %v1171 = vrot.slane %v1170, 1
        %v1172 = vsel %vm588, %v1170, %v1171
        %v1174 = vadd.f32 %v1146, %v1172
        %vm1175 = vcmp.le.s32.totalorder %v499, 13
        %vm1176 = vcmp.le.s32.totalorder %v500, 13
        %vm1177 = vmand %vm943, %vm1175
        %vm1178 = vmand %vm944, %vm1176
        %1180 = vrot.lane.b32.xlu0 %v1160, 112
        %v1181 = vpop.permute.xlu0 %1180
        %v1182 = vrot.slane %v1181, 1
        %v1183 = vsel %vm602, %v1181, %v1182
        %v1185 = vadd.f32 %v1174, %v1183
        %v1187 = vperm.slane %v1185, 0
        %v1188 = vperm.slane %v1185, 1
        %v1189 = vperm.slane %v1185, 2
        %1190 = vrot.lane.b32.xlu0 %v1187, 118
        %v1191 = vpop.permute.xlu0 %1190
        %1192 = vrot.lane.b32.xlu0 %v1188, 118
        %v1193 = vpop.permute.xlu0 %1192
        %1194 = vrot.lane.b32.xlu0 %v1189, 118
        %v1195 = vpop.permute.xlu0 %1194
        %vm1196 = vcmask 965632
        %v1197 = vsel %vm1196, %v1191, %v1193
        %v1198 = vsel %vm1196, %v1193, %v1195
        %v1201 = vsel %vm1177, %v1197, 0.0
        %v1202 = vsel %vm1178, %v1198, 0.0
        %v1203 = vadd.f32 %v971, %v1201
        %v1204 = vadd.f32 %v972, %v1202
        %s1205 = sld [smem:[#allocation4 + $0x6]]
        %s1206 = sld [smem:[#allocation4 + $0x37]]
        %v1207 = vstv %s1205
        %v1208 = vmul.f32 %v503, %v1207
        %v1209 = vstv %s1206
        %v1210 = vmul.f32 %v506, %v1209
        %v1211 = vadd.f32 %v1208, %v1210
        %v1212 = vadd.f32 %v1211, 0.0
        %s1213 = sld [smem:[#allocation4 + $0xd]]
        %s1214 = sld [smem:[#allocation4 + $0x3e]]
        %v1215 = vstv %s1213
        %v1216 = vmul.f32 %v503, %v1215
        %v1217 = vstv %s1214
        %v1218 = vmul.f32 %v506, %v1217
        %v1219 = vadd.f32 %v1216, %v1218
        %v1220 = vadd.f32 %v1219, 0.0
        %s1221 = sld [smem:[#allocation4 + $0x14]]
        %s1222 = sld [smem:[#allocation4 + $0x45]]
        %v1223 = vstv %s1221
        %v1224 = vmul.f32 %v503, %v1223
        %v1225 = vstv %s1222
        %v1226 = vmul.f32 %v506, %v1225
        %v1227 = vadd.f32 %v1224, %v1226
        %1229 = vrot.lane.b32.xlu0 %v1227, 96
        %v1230 = vpop.permute.xlu0 %1229
        %v1231 = vrot.slane %v1230, 1
        %v1232 = vsel %vm530, %v1230, %v1231
        %v1234 = vadd.f32 %v1212, %v1232
        %s1235 = sld [smem:[#allocation4 + $0x1b]]
        %s1236 = sld [smem:[#allocation4 + $0x4c]]
        %v1237 = vstv %s1235
        %v1238 = vmul.f32 %v503, %v1237
        %v1239 = vstv %s1236
        %v1240 = vmul.f32 %v506, %v1239
        %v1241 = vadd.f32 %v1238, %v1240
        %1243 = vrot.lane.b32.xlu0 %v1241, 96
        %v1244 = vpop.permute.xlu0 %1243
        %v1245 = vrot.slane %v1244, 1
        %v1246 = vsel %vm530, %v1244, %v1245
        %v1248 = vadd.f32 %v1220, %v1246
        %s1249 = sld [smem:[#allocation4 + $0x22]]
        %s1250 = sld [smem:[#allocation4 + $0x53]]
        %v1251 = vstv %s1249
        %v1252 = vmul.f32 %v503, %v1251
        %v1253 = vstv %s1250
        %v1254 = vmul.f32 %v506, %v1253
        %v1255 = vadd.f32 %v1252, %v1254
        %1257 = vrot.lane.b32.xlu0 %v1255, 64
        %v1258 = vpop.permute.xlu0 %1257
        %v1259 = vrot.slane %v1258, 1
        %v1260 = vsel %vm559, %v1258, %v1259
        %v1262 = vadd.f32 %v1234, %v1260
        %s1263 = sld [smem:[#allocation4 + $0x29]]
        %s1264 = sld [smem:[#allocation4 + $0x5a]]
        %v1265 = vstv %s1263
        %v1266 = vmul.f32 %v503, %v1265
        %v1267 = vstv %s1264
        %v1268 = vmul.f32 %v506, %v1267
        %v1269 = vadd.f32 %v1266, %v1268
        %1271 = vrot.lane.b32.xlu0 %v1269, 64
        %v1272 = vpop.permute.xlu0 %1271
        %v1273 = vrot.slane %v1272, 1
        %v1274 = vsel %vm559, %v1272, %v1273
        %v1276 = vadd.f32 %v1248, %v1274
        %s1277 = sld [smem:[#allocation4 + $0x30]]
        %s1278 = sld [smem:[#allocation4 + $0x61]]
        %v1279 = vstv %s1277
        %v1280 = vmul.f32 %v503, %v1279
        %v1281 = vstv %s1278
        %v1282 = vmul.f32 %v506, %v1281
        %v1283 = vadd.f32 %v1280, %v1282
        %1285 = vrot.lane.b32.xlu0 %v1283, 32
        %v1286 = vpop.permute.xlu0 %1285
        %v1287 = vrot.slane %v1286, 1
        %v1288 = vsel %vm588, %v1286, %v1287
        %v1290 = vadd.f32 %v1262, %v1288
        %vm1291 = vcmp.le.s32.totalorder %v499, 12
        %vm1292 = vcmp.le.s32.totalorder %v500, 12
        %vm1293 = vmand %vm943, %vm1291
        %vm1294 = vmand %vm944, %vm1292
        %1296 = vrot.lane.b32.xlu0 %v1276, 112
        %v1297 = vpop.permute.xlu0 %1296
        %v1298 = vrot.slane %v1297, 1
        %v1299 = vsel %vm602, %v1297, %v1298
        %v1301 = vadd.f32 %v1290, %v1299
        %v1303 = vperm.slane %v1301, 0
        %v1304 = vperm.slane %v1301, 1
        %v1305 = vperm.slane %v1301, 2
        %1306 = vrot.lane.b32.xlu0 %v1303, 117
        %v1307 = vpop.permute.xlu0 %1306
        %1308 = vrot.lane.b32.xlu0 %v1304, 117
        %v1309 = vpop.permute.xlu0 %1308
        %1310 = vrot.lane.b32.xlu0 %v1305, 117
        %v1311 = vpop.permute.xlu0 %1310
        %vm1312 = vcmask 957440
        %v1313 = vsel %vm1312, %v1307, %v1309
        %v1314 = vsel %vm1312, %v1309, %v1311
        %v1317 = vsel %vm1293, %v1313, 0.0
        %v1318 = vsel %vm1294, %v1314, 0.0
        %v1319 = vadd.f32 %v1087, %v1317
        %v1320 = vadd.f32 %v1088, %v1318
        %v1321 = vadd.f32 %v1319, %v1203
        %v1322 = vadd.f32 %v1320, %v1204
        %v1323 = vxor.u32 %v1321, 2147483648
        %v1324 = vxor.u32 %v1322, 2147483648
        %v1325 = vmul.f32 %v1323, 1.442695
        %v1326 = vpow.pop %v1325
        %v1327 = vmul.f32 %v1324, 1.442695
        %v1328 = vpow.pop %v1327
        %v1329 = vadd.f32 %v1326, 1.0
        %v1330 = vadd.f32 %v1328, 1.0
        %v1331 = vrcp.pop %v1329
        %v1332 = vmul.f32 %v1329, %v1331
        %v1333 = vsub.f32 1.0, %v1332
        %v1334 = vmul.f32 %v1331, %v1333
        %v1335 = vadd.f32 %v1331, %v1334
        %vm1336 = vweird.f32 %v1329
        %vm1337 = vweird.f32 %v1331
        %vm1338 = vmor %vm1336, %vm1337
        %v1339 = vsel %vm1338, %v1331, %v1335
        %v1340 = vand.u32 2147483647, %v1329
        %vm1341 = vcmp.eq.f32.partialorder %v1340, 8.507059e+37
        %v1342 = vand.u32 %v1329, 2147483648
        %v1343 = vor.u32 1.1754944e-38, %v1342
        %v1344 = vsel %vm1341, %v1343, %v1339
        %v1345 = vmul.f32 1.0, %v1344
        %v1346 = vrcp.pop %v1330
        %v1347 = vmul.f32 %v1330, %v1346
        %v1348 = vsub.f32 1.0, %v1347
        %v1349 = vmul.f32 %v1346, %v1348
        %v1350 = vadd.f32 %v1346, %v1349
        %vm1351 = vweird.f32 %v1330
        %vm1352 = vweird.f32 %v1346
        %vm1353 = vmor %vm1351, %vm1352
        %v1354 = vsel %vm1353, %v1346, %v1350
        %v1355 = vand.u32 2147483647, %v1330
        %vm1356 = vcmp.eq.f32.partialorder %v1355, 8.507059e+37
        %v1357 = vand.u32 %v1330, 2147483648
        %v1358 = vor.u32 1.1754944e-38, %v1357
        %v1359 = vsel %vm1356, %v1358, %v1354
        %v1360 = vmul.f32 1.0, %v1359
        %v1361 = vperm.slane %v1345, 0
        %v1362 = vperm.slane %v1360, 0
        %v1363 = vmul.f32 %v404, %v1361
        %v1364 = vmul.f32 %v405, %v1362
        %v1365 = vmul.f32 %v406, %v1361
        %v1366 = vmul.f32 %v407, %v1362
        %1367 = vst [vmem:[%s231] sm:$0xff] %v1363
        %1368 = vst [vmem:[%s231 + $0x8] sm:$0xff] %v1364
        %1369 = vst [vmem:[%s231 + $0x10] sm:$0xff] %v1365
        %1370 = vst [vmem:[%s231 + $0x18] sm:$0xff] %v1366
        %s1371 = sand.u32 %s119, 1
        %s1372 = scalar_lea.sflag [#allocation6], %s1371
        %s1373 = sand.u32 %s119, 1
        %s1374 = smul.addr %s1373, 32
        %s1375 = scalar_lea.vmem [#allocation9], %s1374
        // Predicated region
        $region45: #{tpu_custom_call.1} parent=35 // pred_check
          %p1376 = pneg %p129
        $region46: #{tpu_custom_call.1} parent=35 // pred_check_branch
          %1378 = sbr.rel (%p1376) target = $region48
        $region47: #{tpu_custom_call.1} parent=35 // pred_region
          %1380 = vsyncadd %s1372, 0
          %s1381 = smul.addr %s22, 4
          %s1382 = smul.addr %s1381, 8
          %s1383 = scalar_lea.hbm %s4, %s1382
          %s1384 = sshll.u32 %s1375, 4
          %s1385 = int_to_ptr.vmem [resolvable:$true] %s1384
          %s1386 = sshll.u32 %s1383, 4
          %s1387 = int_to_ptr.hbm [resolvable:$true] %s1386
          %1392 = dma.vmem_to_hbm [thread:$0]  %s1385, 512, %s1387, %s1372, 256, 256, 16
        $region48: #{tpu_custom_call.1} parent=35 // pred_fallthru
          _
      $region36: #{tpu_custom_call.1} parent=5 // pred_fallthru
        _
      %p1393 = scmp.le.s32.totalorder 2, %s17
      // Predicated region
      $region49: #{tpu_custom_call.1} parent=5 // pred_check
        %p1394 = pneg %p1393
      $region50: #{tpu_custom_call.1} parent=5 // pred_check_branch
        %1396 = sbr.rel (%p1394) target = $region52
      $region51: #{tpu_custom_call.1} parent=5 // pred_region
        %s1397 = ssub.s32 %s17, 2
        // Predicated region
        $region53: #{tpu_custom_call.1} parent=51 // pred_check
          %p1398 = pneg %p135
        $region54: #{tpu_custom_call.1} parent=51 // pred_check_branch
          %1400 = sbr.rel (%p1398) target = $region56
        $region55: #{tpu_custom_call.1} parent=51 // pred_region
          %s1401 = sand.u32 %s120, 1
          %s1402 = scalar_lea.sflag [#allocation6], %s1401
          %s1403 = sand.u32 %s120, 1
          %s1404 = smul.addr %s1403, 32
          %s1405 = scalar_lea.vmem [#allocation9], %s1404
          %1407 = dma.done %s1402, 512
        $region56: #{tpu_custom_call.1} parent=51 // pred_fallthru
          _
      $region52: #{tpu_custom_call.1} parent=5 // pred_fallthru
        _
    $region6: #{tpu_custom_call.1} parent=1 // loop_footer
      %s21 = sadd.s32 1, %s17
    $region7: #{tpu_custom_call.1} parent=1 // loop_footer_branch
      %16 = sbr.rel target = $region3
    $region8: #{tpu_custom_call.1} parent=1 // loop_exit
      _
    %1408 = vsyncpa [#allocation5], 1
    %s1409 = scalar_lea.sflag [#allocation5], 1
    %1410 = vsyncpa %s1409, 1
    %1411 = vsyncpa [#allocation6], 1
    %s1412 = scalar_lea.sflag [#allocation6], 1
    %1413 = vsyncpa %s1412, 1
    %1414 = vsyncpa [#allocation7], 1
    %s1415 = scalar_lea.sflag [#allocation7], 1
    %1416 = vsyncpa %s1415, 1

</llo_original>
